<compile_context>
chip_gen: v7x
topology: tpu7x:2x2x1
jax: 0.10.0
libtpu: 0.0.40
codegen_flags: <defaults>
</compile_context>

<pallas_src>
import functools
import math

import jax
import jax.numpy as jnp
from jax.experimental import pallas as pl
from jax.experimental.pallas import tpu as pltpu


# ----------------------------------------------------------------------------
# shared numerics (used inside kernels and in the pure-JAX reference)
# ----------------------------------------------------------------------------
def _layernorm(x, g, b, eps=1e-12):
    mu = jnp.mean(x, axis=-1, keepdims=True)
    var = jnp.mean((x - mu) * (x - mu), axis=-1, keepdims=True)
    return (x - mu) * jax.lax.rsqrt(var + eps) * g + b


def _gelu(x):
    # TODO(synk): HF BERT uses exact erf-GELU; tanh approximation used here.
    c = math.sqrt(2.0 / math.pi)
    return 0.5 * x * (1.0 + jnp.tanh(c * (x + 0.044715 * x * x * x)))


# ----------------------------------------------------------------------------
# Pallas kernel: one full BERT encoder layer for a (batch, query-tile) block
# ----------------------------------------------------------------------------
def _bert_layer_kernel(h_ref, mb_ref,
                       wq_ref, bq_ref, wk_ref, bk_ref, wv_ref, bv_ref,
                       wo_ref, bo_ref, ln1_g_ref, ln1_b_ref,
                       w1_ref, b1_ref, w2_ref, b2_ref, ln2_g_ref, ln2_b_ref,
                       out_ref,
                       qh_s, kT_s, vh_s,
                       *, num_heads, q_block):
    f32 = jnp.float32
    bf16 = jnp.bfloat16
    S, H = h_ref.shape[1], h_ref.shape[2]
    hd = H // num_heads
    scale = 1.0 / math.sqrt(hd)
    qi = pl.program_id(1)

    # ---- K/V projection + head split: ONCE per batch row (the qi axis is
    # "arbitrary"; persistent VMEM scratch carries the heads across tiles). ----
    @pl.when(qi == 0)
    def _():
        hall = h_ref[0]                                           # (S, H) bf16
        k = jnp.dot(hall, wk_ref[...], preferred_element_type=f32) + bk_ref[...]
        v = jnp.dot(hall, wv_ref[...], preferred_element_type=f32) + bv_ref[...]
        for n in range(num_heads):
            sl = slice(n * hd, (n + 1) * hd)
            # K stored pre-transposed (hd, S): lane-dense along S, so the
            # scores einsum is a canonical batched matmul with no per-tile
            # transpose.  Cost amortized over all query tiles of this row.
            kT_s[n] = k[:, sl].T.astype(bf16)
            vh_s[n] = v[:, sl].astype(bf16)

    # ---- query-row tile (sliced from the single full-sequence input) --------
    q_start = pl.multiple_of(qi * q_block, q_block)
    hq = h_ref[0, pl.ds(q_start, q_block), :]                     # (TQ, H) bf16
    hq32 = hq.astype(f32)
    mask_bias = mb_ref[0]                                         # (1, S) f32

    # Q projection: bf16 MXU inputs, f32 accumulation, softmax scale folded in.
    q = (jnp.dot(hq, wq_ref[...], preferred_element_type=f32) + bq_ref[...]) * scale
    for n in range(num_heads):
        qh_s[n] = q[:, n * hd:(n + 1) * hd].astype(bf16)

    # ---- attention over all heads at once ------------------------------------
    # TODO(synk): for true Longformer-length sequences, tile over the key axis
    # with an online-softmax (m/l/acc) loop instead of materializing (nh,TQ,S).
    scores = jnp.einsum("nqd,nds->nqs", qh_s[...], kT_s[...],
                        preferred_element_type=f32) + mask_bias   # (nh, TQ, S)
    m = jnp.max(scores, axis=-1, keepdims=True)
    e = jnp.exp(scores - m)
    p = e * pl.reciprocal(jnp.sum(e, axis=-1, keepdims=True), approx=True)
    ctx = jnp.einsum("nqs,nsd->nqd", p.astype(bf16), vh_s[...],
                     preferred_element_type=f32)                  # (nh, TQ, hd)

    # ---- Wo folded per head (wo arrives pre-reshaped to (nh, hd, H)):
    # skips the (TQ, H) ctx-merge scratch and its masked 64-lane stores. ------
    attn = jnp.zeros((q_block, H), f32)
    for n in range(num_heads):
        attn = attn + jnp.dot(ctx[n].astype(bf16), wo_ref[n],
                              preferred_element_type=f32)
    attn = attn + bo_ref[...]

    x1 = _layernorm(hq32 + attn, ln1_g_ref[...], ln1_b_ref[...])
    ff = _gelu(jnp.dot(x1.astype(bf16), w1_ref[...],
                       preferred_element_type=f32) + b1_ref[...])
    y = jnp.dot(ff.astype(bf16), w2_ref[...],
                preferred_element_type=f32) + b2_ref[...]
    out_ref[0] = _layernorm(x1 + y, ln2_g_ref[...], ln2_b_ref[...]).astype(bf16)


# ----------------------------------------------------------------------------
# per-generation tiling / VMEM knobs
# ----------------------------------------------------------------------------
@functools.lru_cache(maxsize=None)
def _tpu_vmem_knobs():
    """(vmem_limit_bytes, max q_block) derived from the chip's VMEM capacity."""
    try:
        cap = int(pltpu.get_tpu_info().vmem_capacity_bytes)
    except Exception:
        cap = 64 * 1024 * 1024
    vmem_limit = int(min(96 * 1024 * 1024, cap * 3 // 4))
    q_max = 512 if cap >= 100 * 1024 * 1024 else 256   # v5e/v6e: 512, v7x: 256
    return vmem_limit, q_max


def _pick_q_block(S, max_block):
    if S <= max_block:
        return S
    for cand in (512, 256, 128, 64, 32, 16, 8):
        if cand <= max_block and S % cand == 0:
            return cand
    return S


def bert_layer_pallas(h, mask_bias, lp, *, num_heads):
    """One encoder layer; grid = (batch [parallel], query-row tile [arbitrary])."""
    B, S, H = h.shape
    I = lp["w1"].shape[1]
    hd = H // num_heads
    assert hd * num_heads == H
    vmem_limit, q_max = _tpu_vmem_knobs()
    q_block = _pick_q_block(S, q_max)
    n_q = S // q_block

    # head-major Wo so the kernel can apply it per head without a ctx merge
    wo_r = lp["wo"].reshape(num_heads, hd, H)

    def weight(shape):
        # constant index_map -> never re-fetched; single-buffer to save VMEM
        return pl.BlockSpec(shape, lambda b, qi: (0,) * len(shape),
                            pipeline_mode=pl.Buffered(1))

    in_specs = [
        pl.BlockSpec((1, S, H), lambda b, qi: (b, 0, 0)),    # h (bf16), full row
        pl.BlockSpec((1, 1, S), lambda b, qi: (b, 0, 0)),    # additive mask bias
        weight((H, H)), weight((1, H)),                      # Wq, bq
        weight((H, H)), weight((1, H)),                      # Wk, bk
        weight((H, H)), weight((1, H)),                      # Wv, bv
        weight((num_heads, hd, H)), weight((1, H)),          # Wo (head-major), bo
        weight((1, H)), weight((1, H)),                      # LN1 gamma, beta
        weight((H, I)), weight((1, I)),                      # W1, b1
        weight((I, H)), weight((1, H)),                      # W2, b2
        weight((1, H)), weight((1, H)),                      # LN2 gamma, beta
    ]
    scratch_shapes = [
        pltpu.VMEM((num_heads, q_block, hd), jnp.bfloat16),  # Q heads (per tile)
        pltpu.VMEM((num_heads, hd, S), jnp.bfloat16),        # K^T heads (per row)
        pltpu.VMEM((num_heads, S, hd), jnp.bfloat16),        # V heads  (per row)
    ]

    # Advisory cost so XLA schedules the surrounding glue around the call.
    mm_flops = 2 * B * S * H * (4 * H + 2 * I) + 4 * B * num_heads * S * S * hd
    transc = B * num_heads * S * S + B * S * I
    bytes_acc = (2 * (4 * H * H + 2 * H * I)          # bf16 weights
                 + 4 * (8 * H + I)                    # f32 biases / LN params
                 + 2 * 2 * B * S * H + 4 * B * S)     # bf16 h in/out + f32 mask

    return pl.pallas_call(
        functools.partial(_bert_layer_kernel, num_heads=num_heads, q_block=q_block),
        grid=(B, n_q),
        in_specs=in_specs,
        out_specs=pl.BlockSpec((1, q_block, H), lambda b, qi: (b, qi, 0)),
        out_shape=jax.ShapeDtypeStruct((B, S, H), jnp.bfloat16),
        scratch_shapes=scratch_shapes,
        compiler_params=pltpu.CompilerParams(
            dimension_semantics=("parallel", "arbitrary"),
            vmem_limit_bytes=vmem_limit),
        cost_estimate=pl.CostEstimate(flops=int(mm_flops),
                                      transcendentals=int(transc),
                                      bytes_accessed=int(bytes_acc)),
    )(h, mask_bias,
      lp["wq"], lp["bq"], lp["wk"], lp["bk"], lp["wv"], lp["bv"],
      wo_r, lp["bo"], lp["ln1_g"], lp["ln1_b"],
      lp["w1"], lp["b1"], lp["w2"], lp["b2"], lp["ln2_g"], lp["ln2_b"])


# ----------------------------------------------------------------------------
# MyLongformer forward (Pallas-backed encoder; embedding / head are glue)
# ----------------------------------------------------------------------------
def mylongformer_forward(params, input_ids, attention_mask,
                         global_attention_mask=None, labels=None, *, num_heads):
    del global_attention_mask  # accepted but unused, matching the PyTorch module
    B, S = input_ids.shape

    # embeddings (gather) + LayerNorm: plain-JAX glue (XLA fuses).
    emb = (params["word_emb"][input_ids]
           + params["pos_emb"][jnp.arange(S)][None, :, :]
           + params["type_emb"][0][None, None, :])
    h = _layernorm(emb.astype(jnp.float32), params["emb_ln_g"], params["emb_ln_b"])

    # additive attention-mask bias, HF-BERT style
    mask_bias = ((1.0 - attention_mask.astype(jnp.float32)) * -10000.0)[:, None, :]  # (B,1,S)

    # inter-layer activations carried in bf16 (halves HBM traffic per boundary);
    # residual / LayerNorm math stays f32 inside the kernel.
    h = h.astype(jnp.bfloat16)
    for lp in params["layers"]:
        h = bert_layer_pallas(h, mask_bias, lp, num_heads=num_heads)

    # pooler + classifier head: tiny (B,H)x(H,2) matmuls -> plain JAX glue.
    pooled = jnp.tanh(h[:, 0, :].astype(jnp.float32) @ params["pool_w"] + params["pool_b"])
    logits = pooled @ params["cls_w"] + params["cls_b"]
    prob = logits[:, 1]  # non-'completeness' branch: prob = logits[:, 1]

    loss = None
    if labels is not None:
        logp = jax.nn.log_softmax(logits, axis=-1)
        loss = -jnp.mean(jnp.take_along_axis(logp, labels[:, None].astype(jnp.int32), axis=1))
    return prob, loss


# ----------------------------------------------------------------------------
# pure-JAX reference with matching numerics (bf16 matmul inputs / layer I/O,
# f32 accumulation, f32 residual + LayerNorm + softmax)
# ----------------------------------------------------------------------------
def reference_forward(params, input_ids, attention_mask, *, num_heads):
    bf16 = jnp.bfloat16
    f32 = jnp.float32
    B, S = input_ids.shape
    H = params["word_emb"].shape[1]
    hd = H // num_heads
    scale = 1.0 / math.sqrt(hd)

    emb = (params["word_emb"][input_ids]
           + params["pos_emb"][jnp.arange(S)][None, :, :]
           + params["type_emb"][0][None, None, :])
    h = _layernorm(emb.astype(f32), params["emb_ln_g"], params["emb_ln_b"]).astype(bf16)
    mask_bias = ((1.0 - attention_mask.astype(f32)) * -10000.0)[:, None, None, :]  # (B,1,1,S)

    for lp in params["layers"]:
        hb = h
        h32 = hb.astype(f32)
        q = (jnp.einsum("bsh,hk->bsk", hb, lp["wq"], preferred_element_type=f32)
             + lp["bq"]) * scale
        k = jnp.einsum("bsh,hk->bsk", hb, lp["wk"], preferred_element_type=f32) + lp["bk"]
        v = jnp.einsum("bsh,hk->bsk", hb, lp["wv"], preferred_element_type=f32) + lp["bv"]
        qh = q.reshape(B, S, num_heads, hd).astype(bf16)
        kh = k.reshape(B, S, num_heads, hd).astype(bf16)
        vh = v.reshape(B, S, num_heads, hd).astype(bf16)
        scores = jnp.einsum("bqnd,bknd->bnqk", qh, kh, preferred_element_type=f32) + mask_bias
        p = jax.nn.softmax(scores, axis=-1)
        ctx = jnp.einsum("bnqk,bknd->bqnd", p.astype(bf16), vh,
                         preferred_element_type=f32).reshape(B, S, H).astype(bf16)
        attn = jnp.einsum("bsh,hk->bsk", ctx, lp["wo"], preferred_element_type=f32) + lp["bo"]
        x1 = _layernorm(h32 + attn, lp["ln1_g"], lp["ln1_b"])
        ff = _gelu(jnp.einsum("bsh,hi->bsi", x1.astype(bf16), lp["w1"],
                              preferred_element_type=f32) + lp["b1"])
        y = jnp.einsum("bsi,ih->bsh", ff.astype(bf16), lp["w2"],
                       preferred_element_type=f32) + lp["b2"]
        h = _layernorm(x1 + y, lp["ln2_g"], lp["ln2_b"]).astype(bf16)

    pooled = jnp.tanh(h[:, 0, :].astype(f32) @ params["pool_w"] + params["pool_b"])
    logits = pooled @ params["cls_w"] + params["cls_b"]
    return logits[:, 1]


# ----------------------------------------------------------------------------
# deterministic synthetic parameters (checkpoint not loaded -- synthetic kernel)
# ----------------------------------------------------------------------------
def init_params(key, *, vocab, max_pos, H, I, layers, num_labels):
    keys = iter(jax.random.split(key, 64))

    def w(shape, scale=0.02, dtype=jnp.float32):
        return (scale * jax.random.normal(next(keys), shape)).astype(dtype)

    def zeros(shape):
        return jnp.zeros(shape, jnp.float32)

    def ones(shape):
        return jnp.ones(shape, jnp.float32)

    bf16 = jnp.bfloat16
    params = dict(
        word_emb=w((vocab, H)), pos_emb=w((max_pos, H)), type_emb=w((2, H)),
        emb_ln_g=ones((1, H)), emb_ln_b=zeros((1, H)),
        layers=[],
        pool_w=w((H, H)), pool_b=zeros((1, H)),
        cls_w=w((H, num_labels)), cls_b=zeros((1, num_labels)),
    )
    for _ in range(layers):
        params["layers"].append(dict(
            # matmul weights stored in bf16 (MXU-native), biases / LN in f32
            wq=w((H, H), dtype=bf16), bq=zeros((1, H)),
            wk=w((H, H), dtype=bf16), bk=zeros((1, H)),
            wv=w((H, H), dtype=bf16), bv=zeros((1, H)),
            wo=w((H, H), dtype=bf16), bo=zeros((1, H)),
            ln1_g=ones((1, H)), ln1_b=zeros((1, H)),
            w1=w((H, I), dtype=bf16), b1=zeros((1, I)),
            w2=w((I, H), dtype=bf16), b2=zeros((1, H)),
            ln2_g=ones((1, H)), ln2_b=zeros((1, H)),
        ))
    return params


if __name__ == "__main__":
    # small BERT-like config consistent with the module's forward
    B, S = 2, 8
    H, NUM_HEADS, INTER, LAYERS = 32, 4, 64, 2
    VOCAB, MAX_POS, NUM_LABELS = 50, 64, 2

    params = init_params(jax.random.PRNGKey(0), vocab=VOCAB, max_pos=MAX_POS,
                         H=H, I=INTER, layers=LAYERS, num_labels=NUM_LABELS)

    k_ids, _ = jax.random.split(jax.random.PRNGKey(1))
    input_ids = jax.random.randint(k_ids, (B, S), 0, VOCAB, dtype=jnp.int32)
    attention_mask = jnp.ones((B, S), dtype=jnp.int32).at[1, -2:].set(0)
    global_attention_mask = jnp.zeros((B, S), dtype=jnp.int32)  # unused (matches PyTorch module)
    labels = jnp.array([0, 1], dtype=jnp.int32)

    # labels=None path: (prob, None)
    prob, loss = mylongformer_forward(params, input_ids, attention_mask,
                                      global_attention_mask, labels=None,
                                      num_heads=NUM_HEADS)
    prob = jax.block_until_ready(prob)
    assert loss is None and prob.shape == (B,)

    # labels path: cross-entropy loss computed from the same logits (glue)
    prob2, loss2 = mylongformer_forward(params, input_ids, attention_mask,
                                        global_attention_mask, labels=labels,
                                        num_heads=NUM_HEADS)
    jax.block_until_ready(loss2)

    # correctness check vs. pure-JAX reference (same bf16/f32 numerics)
    prob_ref = jax.block_until_ready(
        reference_forward(params, input_ids, attention_mask, num_heads=NUM_HEADS))
    max_err = float(jnp.max(jnp.abs(prob - prob_ref)))
    assert max_err < 5e-3, f"mismatch vs reference: {max_err}"

    print("KERNEL_OK")
</pallas_src>

<mosaic_0001>
module attributes {stable_mosaic.version = 11 : i64} {
  func.func @_bert_layer_kernel(%arg0: i32, %arg1: i32, %arg2: memref<1x8x32xbf16, #tpu.memory_space<vmem>>, %arg3: memref<1x1x8xf32, #tpu.memory_space<vmem>>, %arg4: memref<32x32xbf16, #tpu.memory_space<vmem>>, %arg5: memref<1x32xf32, #tpu.memory_space<vmem>>, %arg6: memref<32x32xbf16, #tpu.memory_space<vmem>>, %arg7: memref<1x32xf32, #tpu.memory_space<vmem>>, %arg8: memref<32x32xbf16, #tpu.memory_space<vmem>>, %arg9: memref<1x32xf32, #tpu.memory_space<vmem>>, %arg10: memref<4x8x32xbf16, #tpu.memory_space<vmem>>, %arg11: memref<1x32xf32, #tpu.memory_space<vmem>>, %arg12: memref<1x32xf32, #tpu.memory_space<vmem>>, %arg13: memref<1x32xf32, #tpu.memory_space<vmem>>, %arg14: memref<32x64xbf16, #tpu.memory_space<vmem>>, %arg15: memref<1x64xf32, #tpu.memory_space<vmem>>, %arg16: memref<64x32xbf16, #tpu.memory_space<vmem>>, %arg17: memref<1x32xf32, #tpu.memory_space<vmem>>, %arg18: memref<1x32xf32, #tpu.memory_space<vmem>>, %arg19: memref<1x32xf32, #tpu.memory_space<vmem>>, %arg20: memref<1x8x32xbf16, #tpu.memory_space<vmem>>, %arg21: memref<4x8x8xbf16, #tpu.memory_space<vmem>>, %arg22: memref<4x8x8xbf16, #tpu.memory_space<vmem>>, %arg23: memref<4x8x8xbf16, #tpu.memory_space<vmem>>) attributes {dimension_semantics = [#tpu.dimension_semantics<parallel>, #tpu.dimension_semantics<arbitrary>], iteration_bounds = array<i64: 2, 1>, scalar_prefetch = 0 : i64, scratch_operands = 3 : i64, tpu.core_type = #tpu.core_type<tc>, window_params = [{transform_indices = @transform_0, window_bounds = array<i64: 1, 8, 32>}, {transform_indices = @transform_1, window_bounds = array<i64: 1, 1, 8>}, {pipeline_mode = #tpu.pipeline_mode<synchronous>, transform_indices = @transform_2, window_bounds = array<i64: 32, 32>}, {pipeline_mode = #tpu.pipeline_mode<synchronous>, transform_indices = @transform_3, window_bounds = array<i64: 1, 32>}, {pipeline_mode = #tpu.pipeline_mode<synchronous>, transform_indices = @transform_4, window_bounds = array<i64: 32, 32>}, {pipeline_mode = #tpu.pipeline_mode<synchronous>, transform_indices = @transform_5, window_bounds = array<i64: 1, 32>}, {pipeline_mode = #tpu.pipeline_mode<synchronous>, transform_indices = @transform_6, window_bounds = array<i64: 32, 32>}, {pipeline_mode = #tpu.pipeline_mode<synchronous>, transform_indices = @transform_7, window_bounds = array<i64: 1, 32>}, {pipeline_mode = #tpu.pipeline_mode<synchronous>, transform_indices = @transform_8, window_bounds = array<i64: 4, 8, 32>}, {pipeline_mode = #tpu.pipeline_mode<synchronous>, transform_indices = @transform_9, window_bounds = array<i64: 1, 32>}, {pipeline_mode = #tpu.pipeline_mode<synchronous>, transform_indices = @transform_10, window_bounds = array<i64: 1, 32>}, {pipeline_mode = #tpu.pipeline_mode<synchronous>, transform_indices = @transform_11, window_bounds = array<i64: 1, 32>}, {pipeline_mode = #tpu.pipeline_mode<synchronous>, transform_indices = @transform_12, window_bounds = array<i64: 32, 64>}, {pipeline_mode = #tpu.pipeline_mode<synchronous>, transform_indices = @transform_13, window_bounds = array<i64: 1, 64>}, {pipeline_mode = #tpu.pipeline_mode<synchronous>, transform_indices = @transform_14, window_bounds = array<i64: 64, 32>}, {pipeline_mode = #tpu.pipeline_mode<synchronous>, transform_indices = @transform_15, window_bounds = array<i64: 1, 32>}, {pipeline_mode = #tpu.pipeline_mode<synchronous>, transform_indices = @transform_16, window_bounds = array<i64: 1, 32>}, {pipeline_mode = #tpu.pipeline_mode<synchronous>, transform_indices = @transform_17, window_bounds = array<i64: 1, 32>}, {transform_indices = @transform_18, window_bounds = array<i64: 1, 8, 32>}]} {
    %c0_i32 = arith.constant 0 : i32
    %0 = arith.cmpi eq, %arg1, %c0_i32 : i32
    %1 = arith.extui %0 : i1 to i32
    %c0_i32_0 = arith.constant 0 : i32
    %2 = arith.cmpi ne, %1, %c0_i32_0 : i32
    scf.if %2 {
      %c0_86 = arith.constant 0 : index
      %c0_87 = arith.constant 0 : index
      %c0_88 = arith.constant 0 : index
      %172 = vector.load %arg2[%c0_86, %c0_87, %c0_88] : memref<1x8x32xbf16, #tpu.memory_space<vmem>>, vector<1x8x32xbf16>
      %173 = vector.shape_cast %172 : vector<1x8x32xbf16> to vector<8x32xbf16>
      %c0_89 = arith.constant 0 : index
      %c0_90 = arith.constant 0 : index
      %174 = vector.load %arg6[%c0_89, %c0_90] : memref<32x32xbf16, #tpu.memory_space<vmem>>, vector<32x32xbf16>
      %cst_91 = arith.constant dense<0.000000e+00> : vector<8x32xf32>
      %175 = tpu.matmul %173, %174, %cst_91 {dimension_numbers = #tpu.dot_dimension_numbers<[1], [0], [0], [1], [0, 0, 1, 1], [], []>} : vector<8x32xbf16>, vector<32x32xbf16>, vector<8x32xf32> -> vector<8x32xf32>
      %c0_92 = arith.constant 0 : index
      %c0_93 = arith.constant 0 : index
      %176 = vector.load %arg7[%c0_92, %c0_93] : memref<1x32xf32, #tpu.memory_space<vmem>>, vector<1x32xf32>
      %177 = vector.broadcast %176 : vector<1x32xf32> to vector<8x32xf32>
      %178 = arith.addf %175, %177 : vector<8x32xf32>
      %c0_94 = arith.constant 0 : index
      %c0_95 = arith.constant 0 : index
      %179 = vector.load %arg8[%c0_94, %c0_95] : memref<32x32xbf16, #tpu.memory_space<vmem>>, vector<32x32xbf16>
      %cst_96 = arith.constant dense<0.000000e+00> : vector<8x32xf32>
      %180 = tpu.matmul %173, %179, %cst_96 {dimension_numbers = #tpu.dot_dimension_numbers<[1], [0], [0], [1], [0, 0, 1, 1], [], []>} : vector<8x32xbf16>, vector<32x32xbf16>, vector<8x32xf32> -> vector<8x32xf32>
      %c0_97 = arith.constant 0 : index
      %c0_98 = arith.constant 0 : index
      %181 = vector.load %arg9[%c0_97, %c0_98] : memref<1x32xf32, #tpu.memory_space<vmem>>, vector<1x32xf32>
      %182 = vector.broadcast %181 : vector<1x32xf32> to vector<8x32xf32>
      %183 = arith.addf %180, %182 : vector<8x32xf32>
      %184 = vector.extract_strided_slice %178 {offsets = [0, 0], sizes = [8, 8], strides = [1, 1]} : vector<8x32xf32> to vector<8x8xf32>
      %185 = tpu.transpose %184, [1, 0] : vector<8x8xf32> -> vector<8x8xf32>
      %186 = arith.truncf %185 : vector<8x8xf32> to vector<8x8xbf16>
      %c0_99 = arith.constant 0 : index
      %c0_100 = arith.constant 0 : index
      %c0_101 = arith.constant 0 : index
      %187 = vector.load %arg22[%c0_99, %c0_100, %c0_101] : memref<4x8x8xbf16, #tpu.memory_space<vmem>>, vector<1x8x8xbf16>
      %188 = vector.shape_cast %187 : vector<1x8x8xbf16> to vector<8x8xbf16>
      %189 = vector.shape_cast %186 : vector<8x8xbf16> to vector<1x8x8xbf16>
      tpu.vector_store %arg22[%c0_99, %c0_100, %c0_101], %189 {strides = array<i32>} : memref<4x8x8xbf16, #tpu.memory_space<vmem>>, vector<1x8x8xbf16>,
      %190 = vector.extract_strided_slice %183 {offsets = [0, 0], sizes = [8, 8], strides = [1, 1]} : vector<8x32xf32> to vector<8x8xf32>
      %191 = arith.truncf %190 : vector<8x8xf32> to vector<8x8xbf16>
      %c0_102 = arith.constant 0 : index
      %c0_103 = arith.constant 0 : index
      %c0_104 = arith.constant 0 : index
      %192 = vector.load %arg23[%c0_102, %c0_103, %c0_104] : memref<4x8x8xbf16, #tpu.memory_space<vmem>>, vector<1x8x8xbf16>
      %193 = vector.shape_cast %192 : vector<1x8x8xbf16> to vector<8x8xbf16>
      %194 = vector.shape_cast %191 : vector<8x8xbf16> to vector<1x8x8xbf16>
      tpu.vector_store %arg23[%c0_102, %c0_103, %c0_104], %194 {strides = array<i32>} : memref<4x8x8xbf16, #tpu.memory_space<vmem>>, vector<1x8x8xbf16>,
      %195 = vector.extract_strided_slice %178 {offsets = [0, 8], sizes = [8, 8], strides = [1, 1]} : vector<8x32xf32> to vector<8x8xf32>
      %196 = tpu.transpose %195, [1, 0] : vector<8x8xf32> -> vector<8x8xf32>
      %197 = arith.truncf %196 : vector<8x8xf32> to vector<8x8xbf16>
      %c1_105 = arith.constant 1 : index
      %c0_106 = arith.constant 0 : index
      %c0_107 = arith.constant 0 : index
      %198 = vector.load %arg22[%c1_105, %c0_106, %c0_107] : memref<4x8x8xbf16, #tpu.memory_space<vmem>>, vector<1x8x8xbf16>
      %199 = vector.shape_cast %198 : vector<1x8x8xbf16> to vector<8x8xbf16>
      %200 = vector.shape_cast %197 : vector<8x8xbf16> to vector<1x8x8xbf16>
      tpu.vector_store %arg22[%c1_105, %c0_106, %c0_107], %200 {strides = array<i32>} : memref<4x8x8xbf16, #tpu.memory_space<vmem>>, vector<1x8x8xbf16>,
      %201 = vector.extract_strided_slice %183 {offsets = [0, 8], sizes = [8, 8], strides = [1, 1]} : vector<8x32xf32> to vector<8x8xf32>
      %202 = arith.truncf %201 : vector<8x8xf32> to vector<8x8xbf16>
      %c1_108 = arith.constant 1 : index
      %c0_109 = arith.constant 0 : index
      %c0_110 = arith.constant 0 : index
      %203 = vector.load %arg23[%c1_108, %c0_109, %c0_110] : memref<4x8x8xbf16, #tpu.memory_space<vmem>>, vector<1x8x8xbf16>
      %204 = vector.shape_cast %203 : vector<1x8x8xbf16> to vector<8x8xbf16>
      %205 = vector.shape_cast %202 : vector<8x8xbf16> to vector<1x8x8xbf16>
      tpu.vector_store %arg23[%c1_108, %c0_109, %c0_110], %205 {strides = array<i32>} : memref<4x8x8xbf16, #tpu.memory_space<vmem>>, vector<1x8x8xbf16>,
      %206 = vector.extract_strided_slice %178 {offsets = [0, 16], sizes = [8, 8], strides = [1, 1]} : vector<8x32xf32> to vector<8x8xf32>
      %207 = tpu.transpose %206, [1, 0] : vector<8x8xf32> -> vector<8x8xf32>
      %208 = arith.truncf %207 : vector<8x8xf32> to vector<8x8xbf16>
      %c2_111 = arith.constant 2 : index
      %c0_112 = arith.constant 0 : index
      %c0_113 = arith.constant 0 : index
      %209 = vector.load %arg22[%c2_111, %c0_112, %c0_113] : memref<4x8x8xbf16, #tpu.memory_space<vmem>>, vector<1x8x8xbf16>
      %210 = vector.shape_cast %209 : vector<1x8x8xbf16> to vector<8x8xbf16>
      %211 = vector.shape_cast %208 : vector<8x8xbf16> to vector<1x8x8xbf16>
      tpu.vector_store %arg22[%c2_111, %c0_112, %c0_113], %211 {strides = array<i32>} : memref<4x8x8xbf16, #tpu.memory_space<vmem>>, vector<1x8x8xbf16>,
      %212 = vector.extract_strided_slice %183 {offsets = [0, 16], sizes = [8, 8], strides = [1, 1]} : vector<8x32xf32> to vector<8x8xf32>
      %213 = arith.truncf %212 : vector<8x8xf32> to vector<8x8xbf16>
      %c2_114 = arith.constant 2 : index
      %c0_115 = arith.constant 0 : index
      %c0_116 = arith.constant 0 : index
      %214 = vector.load %arg23[%c2_114, %c0_115, %c0_116] : memref<4x8x8xbf16, #tpu.memory_space<vmem>>, vector<1x8x8xbf16>
      %215 = vector.shape_cast %214 : vector<1x8x8xbf16> to vector<8x8xbf16>
      %216 = vector.shape_cast %213 : vector<8x8xbf16> to vector<1x8x8xbf16>
      tpu.vector_store %arg23[%c2_114, %c0_115, %c0_116], %216 {strides = array<i32>} : memref<4x8x8xbf16, #tpu.memory_space<vmem>>, vector<1x8x8xbf16>,
      %217 = vector.extract_strided_slice %178 {offsets = [0, 24], sizes = [8, 8], strides = [1, 1]} : vector<8x32xf32> to vector<8x8xf32>
      %218 = tpu.transpose %217, [1, 0] : vector<8x8xf32> -> vector<8x8xf32>
      %219 = arith.truncf %218 : vector<8x8xf32> to vector<8x8xbf16>
      %c3_117 = arith.constant 3 : index
      %c0_118 = arith.constant 0 : index
      %c0_119 = arith.constant 0 : index
      %220 = vector.load %arg22[%c3_117, %c0_118, %c0_119] : memref<4x8x8xbf16, #tpu.memory_space<vmem>>, vector<1x8x8xbf16>
      %221 = vector.shape_cast %220 : vector<1x8x8xbf16> to vector<8x8xbf16>
      %222 = vector.shape_cast %219 : vector<8x8xbf16> to vector<1x8x8xbf16>
      tpu.vector_store %arg22[%c3_117, %c0_118, %c0_119], %222 {strides = array<i32>} : memref<4x8x8xbf16, #tpu.memory_space<vmem>>, vector<1x8x8xbf16>,
      %223 = vector.extract_strided_slice %183 {offsets = [0, 24], sizes = [8, 8], strides = [1, 1]} : vector<8x32xf32> to vector<8x8xf32>
      %224 = arith.truncf %223 : vector<8x8xf32> to vector<8x8xbf16>
      %c3_120 = arith.constant 3 : index
      %c0_121 = arith.constant 0 : index
      %c0_122 = arith.constant 0 : index
      %225 = vector.load %arg23[%c3_120, %c0_121, %c0_122] : memref<4x8x8xbf16, #tpu.memory_space<vmem>>, vector<1x8x8xbf16>
      %226 = vector.shape_cast %225 : vector<1x8x8xbf16> to vector<8x8xbf16>
      %227 = vector.shape_cast %224 : vector<8x8xbf16> to vector<1x8x8xbf16>
      tpu.vector_store %arg23[%c3_120, %c0_121, %c0_122], %227 {strides = array<i32>} : memref<4x8x8xbf16, #tpu.memory_space<vmem>>, vector<1x8x8xbf16>,
    } else {
    }
    %c8_i32 = arith.constant 8 : i32
    %3 = arith.muli %arg1, %c8_i32 : i32
    %4 = tpu.assume_multiple %3, 8 : i32
    %c0 = arith.constant 0 : index
    %5 = arith.index_cast %4 : i32 to index
    %c0_1 = arith.constant 0 : index
    %6 = vector.load %arg2[%c0, %5, %c0_1] : memref<1x8x32xbf16, #tpu.memory_space<vmem>>, vector<1x8x32xbf16>
    %7 = vector.shape_cast %6 : vector<1x8x32xbf16> to vector<8x32xbf16>
    %8 = arith.extf %7 : vector<8x32xbf16> to vector<8x32xf32>
    %c0_2 = arith.constant 0 : index
    %c0_3 = arith.constant 0 : index
    %c0_4 = arith.constant 0 : index
    %9 = vector.load %arg3[%c0_2, %c0_3, %c0_4] : memref<1x1x8xf32, #tpu.memory_space<vmem>>, vector<1x1x8xf32>
    %10 = vector.shape_cast %9 : vector<1x1x8xf32> to vector<1x8xf32>
    %c0_5 = arith.constant 0 : index
    %c0_6 = arith.constant 0 : index
    %11 = vector.load %arg4[%c0_5, %c0_6] : memref<32x32xbf16, #tpu.memory_space<vmem>>, vector<32x32xbf16>
    %cst = arith.constant dense<0.000000e+00> : vector<8x32xf32>
    %12 = tpu.matmul %7, %11, %cst {dimension_numbers = #tpu.dot_dimension_numbers<[1], [0], [0], [1], [0, 0, 1, 1], [], []>} : vector<8x32xbf16>, vector<32x32xbf16>, vector<8x32xf32> -> vector<8x32xf32>
    %c0_7 = arith.constant 0 : index
    %c0_8 = arith.constant 0 : index
    %13 = vector.load %arg5[%c0_7, %c0_8] : memref<1x32xf32, #tpu.memory_space<vmem>>, vector<1x32xf32>
    %14 = vector.broadcast %13 : vector<1x32xf32> to vector<8x32xf32>
    %15 = arith.addf %12, %14 : vector<8x32xf32>
    %cst_9 = arith.constant 0.353553385 : f32
    %16 = vector.broadcast %cst_9 : f32 to vector<8x32xf32>
    %17 = arith.mulf %15, %16 : vector<8x32xf32>
    %18 = vector.extract_strided_slice %17 {offsets = [0, 0], sizes = [8, 8], strides = [1, 1]} : vector<8x32xf32> to vector<8x8xf32>
    %19 = arith.truncf %18 : vector<8x8xf32> to vector<8x8xbf16>
    %c0_10 = arith.constant 0 : index
    %c0_11 = arith.constant 0 : index
    %c0_12 = arith.constant 0 : index
    %20 = vector.load %arg21[%c0_10, %c0_11, %c0_12] : memref<4x8x8xbf16, #tpu.memory_space<vmem>>, vector<1x8x8xbf16>
    %21 = vector.shape_cast %20 : vector<1x8x8xbf16> to vector<8x8xbf16>
    %22 = vector.shape_cast %19 : vector<8x8xbf16> to vector<1x8x8xbf16>
    tpu.vector_store %arg21[%c0_10, %c0_11, %c0_12], %22 {strides = array<i32>} : memref<4x8x8xbf16, #tpu.memory_space<vmem>>, vector<1x8x8xbf16>,
    %23 = vector.extract_strided_slice %17 {offsets = [0, 8], sizes = [8, 8], strides = [1, 1]} : vector<8x32xf32> to vector<8x8xf32>
    %24 = arith.truncf %23 : vector<8x8xf32> to vector<8x8xbf16>
    %c1 = arith.constant 1 : index
    %c0_13 = arith.constant 0 : index
    %c0_14 = arith.constant 0 : index
    %25 = vector.load %arg21[%c1, %c0_13, %c0_14] : memref<4x8x8xbf16, #tpu.memory_space<vmem>>, vector<1x8x8xbf16>
    %26 = vector.shape_cast %25 : vector<1x8x8xbf16> to vector<8x8xbf16>
    %27 = vector.shape_cast %24 : vector<8x8xbf16> to vector<1x8x8xbf16>
    tpu.vector_store %arg21[%c1, %c0_13, %c0_14], %27 {strides = array<i32>} : memref<4x8x8xbf16, #tpu.memory_space<vmem>>, vector<1x8x8xbf16>,
    %28 = vector.extract_strided_slice %17 {offsets = [0, 16], sizes = [8, 8], strides = [1, 1]} : vector<8x32xf32> to vector<8x8xf32>
    %29 = arith.truncf %28 : vector<8x8xf32> to vector<8x8xbf16>
    %c2 = arith.constant 2 : index
    %c0_15 = arith.constant 0 : index
    %c0_16 = arith.constant 0 : index
    %30 = vector.load %arg21[%c2, %c0_15, %c0_16] : memref<4x8x8xbf16, #tpu.memory_space<vmem>>, vector<1x8x8xbf16>
    %31 = vector.shape_cast %30 : vector<1x8x8xbf16> to vector<8x8xbf16>
    %32 = vector.shape_cast %29 : vector<8x8xbf16> to vector<1x8x8xbf16>
    tpu.vector_store %arg21[%c2, %c0_15, %c0_16], %32 {strides = array<i32>} : memref<4x8x8xbf16, #tpu.memory_space<vmem>>, vector<1x8x8xbf16>,
    %33 = vector.extract_strided_slice %17 {offsets = [0, 24], sizes = [8, 8], strides = [1, 1]} : vector<8x32xf32> to vector<8x8xf32>
    %34 = arith.truncf %33 : vector<8x8xf32> to vector<8x8xbf16>
    %c3 = arith.constant 3 : index
    %c0_17 = arith.constant 0 : index
    %c0_18 = arith.constant 0 : index
    %35 = vector.load %arg21[%c3, %c0_17, %c0_18] : memref<4x8x8xbf16, #tpu.memory_space<vmem>>, vector<1x8x8xbf16>
    %36 = vector.shape_cast %35 : vector<1x8x8xbf16> to vector<8x8xbf16>
    %37 = vector.shape_cast %34 : vector<8x8xbf16> to vector<1x8x8xbf16>
    tpu.vector_store %arg21[%c3, %c0_17, %c0_18], %37 {strides = array<i32>} : memref<4x8x8xbf16, #tpu.memory_space<vmem>>, vector<1x8x8xbf16>,
    %c0_19 = arith.constant 0 : index
    %c0_20 = arith.constant 0 : index
    %c0_21 = arith.constant 0 : index
    %38 = vector.load %arg21[%c0_19, %c0_20, %c0_21] : memref<4x8x8xbf16, #tpu.memory_space<vmem>>, vector<4x8x8xbf16>
    %c0_22 = arith.constant 0 : index
    %c0_23 = arith.constant 0 : index
    %c0_24 = arith.constant 0 : index
    %39 = vector.load %arg22[%c0_22, %c0_23, %c0_24] : memref<4x8x8xbf16, #tpu.memory_space<vmem>>, vector<4x8x8xbf16>
    "tpu.trace_start"() <{level = 10 : i32, message = "nqd,nds->nqs"}> : () -> ()
    %cst_25 = arith.constant dense<0.000000e+00> : vector<4x8x8xf32>
    %40 = tpu.matmul %38, %39, %cst_25 {dimension_numbers = #tpu.dot_dimension_numbers<[2], [1], [1], [2], [0, 0, 0, 1, 1, 2], [0], [0]>} : vector<4x8x8xbf16>, vector<4x8x8xbf16>, vector<4x8x8xf32> -> vector<4x8x8xf32>
    "tpu.trace_stop"() : () -> ()
    %41 = vector.shape_cast %10 : vector<1x8xf32> to vector<1x1x8xf32>
    %42 = vector.broadcast %41 : vector<1x1x8xf32> to vector<4x8x8xf32>
    %43 = arith.addf %40, %42 : vector<4x8x8xf32>
    %cst_26 = arith.constant dense<0xFF800000> : vector<4x8xf32>
    %44 = vector.multi_reduction <maximumf>, %43, %cst_26 [2] : vector<4x8x8xf32> to vector<4x8xf32>
    %45 = vector.shape_cast %44 : vector<4x8xf32> to vector<4x8x1xf32>
    %46 = vector.broadcast %45 : vector<4x8x1xf32> to vector<4x8x8xf32>
    %47 = arith.subf %43, %46 : vector<4x8x8xf32>
    %48 = math.exp %47 : vector<4x8x8xf32>
    %cst_27 = arith.constant dense<0.000000e+00> : vector<4x8xf32>
    %49 = vector.multi_reduction <add>, %48, %cst_27 [2] : vector<4x8x8xf32> to vector<4x8xf32>
    %50 = vector.shape_cast %49 : vector<4x8xf32> to vector<4x8x1xf32>
    %51 = tpu.reciprocal %50 {approx = true} : vector<4x8x1xf32> -> vector<4x8x1xf32>
    %52 = vector.broadcast %51 : vector<4x8x1xf32> to vector<4x8x8xf32>
    %53 = arith.mulf %48, %52 : vector<4x8x8xf32>
    %54 = arith.truncf %53 : vector<4x8x8xf32> to vector<4x8x8xbf16>
    %c0_28 = arith.constant 0 : index
    %c0_29 = arith.constant 0 : index
    %c0_30 = arith.constant 0 : index
    %55 = vector.load %arg23[%c0_28, %c0_29, %c0_30] : memref<4x8x8xbf16, #tpu.memory_space<vmem>>, vector<4x8x8xbf16>
    "tpu.trace_start"() <{level = 10 : i32, message = "nqs,nsd->nqd"}> : () -> ()
    %cst_31 = arith.constant dense<0.000000e+00> : vector<4x8x8xf32>
    %56 = tpu.matmul %54, %55, %cst_31 {dimension_numbers = #tpu.dot_dimension_numbers<[2], [1], [1], [2], [0, 0, 0, 1, 1, 2], [0], [0]>} : vector<4x8x8xbf16>, vector<4x8x8xbf16>, vector<4x8x8xf32> -> vector<4x8x8xf32>
    %cst_32 = arith.constant 0.000000e+00 : f32
    "tpu.trace_stop"() : () -> ()
    %57 = vector.broadcast %cst_32 : f32 to vector<8x32xf32>
    %58 = vector.extract_strided_slice %56 {offsets = [0, 0, 0], sizes = [1, 8, 8], strides = [1, 1, 1]} : vector<4x8x8xf32> to vector<1x8x8xf32>
    %59 = vector.shape_cast %58 : vector<1x8x8xf32> to vector<8x8xf32>
    %60 = arith.truncf %59 : vector<8x8xf32> to vector<8x8xbf16>
    %c0_33 = arith.constant 0 : index
    %c0_34 = arith.constant 0 : index
    %c0_35 = arith.constant 0 : index
    %61 = vector.load %arg10[%c0_33, %c0_34, %c0_35] : memref<4x8x32xbf16, #tpu.memory_space<vmem>>, vector<1x8x32xbf16>
    %62 = vector.shape_cast %61 : vector<1x8x32xbf16> to vector<8x32xbf16>
    %cst_36 = arith.constant dense<0.000000e+00> : vector<8x32xf32>
    %63 = tpu.matmul %60, %62, %cst_36 {dimension_numbers = #tpu.dot_dimension_numbers<[1], [0], [0], [1], [0, 0, 1, 1], [], []>} : vector<8x8xbf16>, vector<8x32xbf16>, vector<8x32xf32> -> vector<8x32xf32>
    %64 = arith.addf %57, %63 : vector<8x32xf32>
    %65 = vector.extract_strided_slice %56 {offsets = [1, 0, 0], sizes = [1, 8, 8], strides = [1, 1, 1]} : vector<4x8x8xf32> to vector<1x8x8xf32>
    %66 = vector.shape_cast %65 : vector<1x8x8xf32> to vector<8x8xf32>
    %67 = arith.truncf %66 : vector<8x8xf32> to vector<8x8xbf16>
    %c1_37 = arith.constant 1 : index
    %c0_38 = arith.constant 0 : index
    %c0_39 = arith.constant 0 : index
    %68 = vector.load %arg10[%c1_37, %c0_38, %c0_39] : memref<4x8x32xbf16, #tpu.memory_space<vmem>>, vector<1x8x32xbf16>
    %69 = vector.shape_cast %68 : vector<1x8x32xbf16> to vector<8x32xbf16>
    %cst_40 = arith.constant dense<0.000000e+00> : vector<8x32xf32>
    %70 = tpu.matmul %67, %69, %cst_40 {dimension_numbers = #tpu.dot_dimension_numbers<[1], [0], [0], [1], [0, 0, 1, 1], [], []>} : vector<8x8xbf16>, vector<8x32xbf16>, vector<8x32xf32> -> vector<8x32xf32>
    %71 = arith.addf %64, %70 : vector<8x32xf32>
    %72 = vector.extract_strided_slice %56 {offsets = [2, 0, 0], sizes = [1, 8, 8], strides = [1, 1, 1]} : vector<4x8x8xf32> to vector<1x8x8xf32>
    %73 = vector.shape_cast %72 : vector<1x8x8xf32> to vector<8x8xf32>
    %74 = arith.truncf %73 : vector<8x8xf32> to vector<8x8xbf16>
    %c2_41 = arith.constant 2 : index
    %c0_42 = arith.constant 0 : index
    %c0_43 = arith.constant 0 : index
    %75 = vector.load %arg10[%c2_41, %c0_42, %c0_43] : memref<4x8x32xbf16, #tpu.memory_space<vmem>>, vector<1x8x32xbf16>
    %76 = vector.shape_cast %75 : vector<1x8x32xbf16> to vector<8x32xbf16>
    %cst_44 = arith.constant dense<0.000000e+00> : vector<8x32xf32>
    %77 = tpu.matmul %74, %76, %cst_44 {dimension_numbers = #tpu.dot_dimension_numbers<[1], [0], [0], [1], [0, 0, 1, 1], [], []>} : vector<8x8xbf16>, vector<8x32xbf16>, vector<8x32xf32> -> vector<8x32xf32>
    %78 = arith.addf %71, %77 : vector<8x32xf32>
    %79 = vector.extract_strided_slice %56 {offsets = [3, 0, 0], sizes = [1, 8, 8], strides = [1, 1, 1]} : vector<4x8x8xf32> to vector<1x8x8xf32>
    %80 = vector.shape_cast %79 : vector<1x8x8xf32> to vector<8x8xf32>
    %81 = arith.truncf %80 : vector<8x8xf32> to vector<8x8xbf16>
    %c3_45 = arith.constant 3 : index
    %c0_46 = arith.constant 0 : index
    %c0_47 = arith.constant 0 : index
    %82 = vector.load %arg10[%c3_45, %c0_46, %c0_47] : memref<4x8x32xbf16, #tpu.memory_space<vmem>>, vector<1x8x32xbf16>
    %83 = vector.shape_cast %82 : vector<1x8x32xbf16> to vector<8x32xbf16>
    %cst_48 = arith.constant dense<0.000000e+00> : vector<8x32xf32>
    %84 = tpu.matmul %81, %83, %cst_48 {dimension_numbers = #tpu.dot_dimension_numbers<[1], [0], [0], [1], [0, 0, 1, 1], [], []>} : vector<8x8xbf16>, vector<8x32xbf16>, vector<8x32xf32> -> vector<8x32xf32>
    %85 = arith.addf %78, %84 : vector<8x32xf32>
    %c0_49 = arith.constant 0 : index
    %c0_50 = arith.constant 0 : index
    %86 = vector.load %arg11[%c0_49, %c0_50] : memref<1x32xf32, #tpu.memory_space<vmem>>, vector<1x32xf32>
    %87 = vector.broadcast %86 : vector<1x32xf32> to vector<8x32xf32>
    %88 = arith.addf %85, %87 : vector<8x32xf32>
    %89 = arith.addf %8, %88 : vector<8x32xf32>
    %c0_51 = arith.constant 0 : index
    %c0_52 = arith.constant 0 : index
    %90 = vector.load %arg12[%c0_51, %c0_52] : memref<1x32xf32, #tpu.memory_space<vmem>>, vector<1x32xf32>
    %c0_53 = arith.constant 0 : index
    %c0_54 = arith.constant 0 : index
    %91 = vector.load %arg13[%c0_53, %c0_54] : memref<1x32xf32, #tpu.memory_space<vmem>>, vector<1x32xf32>
    %cst_55 = arith.constant dense<0.000000e+00> : vector<8xf32>
    %92 = vector.multi_reduction <add>, %89, %cst_55 [1] : vector<8x32xf32> to vector<8xf32>
    %93 = vector.shape_cast %92 : vector<8xf32> to vector<8x1xf32>
    %cst_56 = arith.constant 3.200000e+01 : f32
    %94 = vector.broadcast %cst_56 : f32 to vector<8x1xf32>
    %95 = arith.divf %93, %94 : vector<8x1xf32>
    %96 = vector.broadcast %95 : vector<8x1xf32> to vector<8x32xf32>
    %97 = arith.subf %89, %96 : vector<8x32xf32>
    %98 = vector.broadcast %95 : vector<8x1xf32> to vector<8x32xf32>
    %99 = arith.subf %89, %98 : vector<8x32xf32>
    %100 = arith.mulf %97, %99 : vector<8x32xf32>
    %cst_57 = arith.constant dense<0.000000e+00> : vector<8xf32>
    %101 = vector.multi_reduction <add>, %100, %cst_57 [1] : vector<8x32xf32> to vector<8xf32>
    %102 = vector.shape_cast %101 : vector<8xf32> to vector<8x1xf32>
    %cst_58 = arith.constant 3.200000e+01 : f32
    %103 = vector.broadcast %cst_58 : f32 to vector<8x1xf32>
    %104 = arith.divf %102, %103 : vector<8x1xf32>
    %105 = vector.broadcast %95 : vector<8x1xf32> to vector<8x32xf32>
    %106 = arith.subf %89, %105 : vector<8x32xf32>
    %cst_59 = arith.constant 9.99999996E-13 : f32
    %107 = vector.broadcast %cst_59 : f32 to vector<8x1xf32>
    %108 = arith.addf %104, %107 : vector<8x1xf32>
    %109 = math.rsqrt %108 : vector<8x1xf32>
    %110 = vector.broadcast %109 : vector<8x1xf32> to vector<8x32xf32>
    %111 = arith.mulf %106, %110 : vector<8x32xf32>
    %112 = vector.broadcast %90 : vector<1x32xf32> to vector<8x32xf32>
    %113 = arith.mulf %111, %112 : vector<8x32xf32>
    %114 = vector.broadcast %91 : vector<1x32xf32> to vector<8x32xf32>
    %115 = arith.addf %113, %114 : vector<8x32xf32>
    %116 = arith.truncf %115 : vector<8x32xf32> to vector<8x32xbf16>
    %c0_60 = arith.constant 0 : index
    %c0_61 = arith.constant 0 : index
    %117 = vector.load %arg14[%c0_60, %c0_61] : memref<32x64xbf16, #tpu.memory_space<vmem>>, vector<32x64xbf16>
    %cst_62 = arith.constant dense<0.000000e+00> : vector<8x64xf32>
    %118 = tpu.matmul %116, %117, %cst_62 {dimension_numbers = #tpu.dot_dimension_numbers<[1], [0], [0], [1], [0, 0, 1, 1], [], []>} : vector<8x32xbf16>, vector<32x64xbf16>, vector<8x64xf32> -> vector<8x64xf32>
    %c0_63 = arith.constant 0 : index
    %c0_64 = arith.constant 0 : index
    %119 = vector.load %arg15[%c0_63, %c0_64] : memref<1x64xf32, #tpu.memory_space<vmem>>, vector<1x64xf32>
    %120 = vector.broadcast %119 : vector<1x64xf32> to vector<8x64xf32>
    %121 = arith.addf %118, %120 : vector<8x64xf32>
    %cst_65 = arith.constant 5.000000e-01 : f32
    %122 = vector.broadcast %cst_65 : f32 to vector<8x64xf32>
    %123 = arith.mulf %122, %121 : vector<8x64xf32>
    %cst_66 = arith.constant 4.471500e-02 : f32
    %124 = vector.broadcast %cst_66 : f32 to vector<8x64xf32>
    %125 = arith.mulf %124, %121 : vector<8x64xf32>
    %126 = arith.mulf %125, %121 : vector<8x64xf32>
    %127 = arith.mulf %126, %121 : vector<8x64xf32>
    %128 = arith.addf %121, %127 : vector<8x64xf32>
    %cst_67 = arith.constant 0.797884583 : f32
    %129 = vector.broadcast %cst_67 : f32 to vector<8x64xf32>
    %130 = arith.mulf %129, %128 : vector<8x64xf32>
    %131 = math.tanh %130 : vector<8x64xf32>
    %cst_68 = arith.constant 1.000000e+00 : f32
    %132 = vector.broadcast %cst_68 : f32 to vector<8x64xf32>
    %133 = arith.addf %132, %131 : vector<8x64xf32>
    %134 = arith.mulf %123, %133 : vector<8x64xf32>
    %135 = arith.truncf %134 : vector<8x64xf32> to vector<8x64xbf16>
    %c0_69 = arith.constant 0 : index
    %c0_70 = arith.constant 0 : index
    %136 = vector.load %arg16[%c0_69, %c0_70] : memref<64x32xbf16, #tpu.memory_space<vmem>>, vector<64x32xbf16>
    %cst_71 = arith.constant dense<0.000000e+00> : vector<8x32xf32>
    %137 = tpu.matmul %135, %136, %cst_71 {dimension_numbers = #tpu.dot_dimension_numbers<[1], [0], [0], [1], [0, 0, 1, 1], [], []>} : vector<8x64xbf16>, vector<64x32xbf16>, vector<8x32xf32> -> vector<8x32xf32>
    %c0_72 = arith.constant 0 : index
    %c0_73 = arith.constant 0 : index
    %138 = vector.load %arg17[%c0_72, %c0_73] : memref<1x32xf32, #tpu.memory_space<vmem>>, vector<1x32xf32>
    %139 = vector.broadcast %138 : vector<1x32xf32> to vector<8x32xf32>
    %140 = arith.addf %137, %139 : vector<8x32xf32>
    %141 = arith.addf %115, %140 : vector<8x32xf32>
    %c0_74 = arith.constant 0 : index
    %c0_75 = arith.constant 0 : index
    %142 = vector.load %arg18[%c0_74, %c0_75] : memref<1x32xf32, #tpu.memory_space<vmem>>, vector<1x32xf32>
    %c0_76 = arith.constant 0 : index
    %c0_77 = arith.constant 0 : index
    %143 = vector.load %arg19[%c0_76, %c0_77] : memref<1x32xf32, #tpu.memory_space<vmem>>, vector<1x32xf32>
    %cst_78 = arith.constant dense<0.000000e+00> : vector<8xf32>
    %144 = vector.multi_reduction <add>, %141, %cst_78 [1] : vector<8x32xf32> to vector<8xf32>
    %145 = vector.shape_cast %144 : vector<8xf32> to vector<8x1xf32>
    %cst_79 = arith.constant 3.200000e+01 : f32
    %146 = vector.broadcast %cst_79 : f32 to vector<8x1xf32>
    %147 = arith.divf %145, %146 : vector<8x1xf32>
    %148 = vector.broadcast %147 : vector<8x1xf32> to vector<8x32xf32>
    %149 = arith.subf %141, %148 : vector<8x32xf32>
    %150 = vector.broadcast %147 : vector<8x1xf32> to vector<8x32xf32>
    %151 = arith.subf %141, %150 : vector<8x32xf32>
    %152 = arith.mulf %149, %151 : vector<8x32xf32>
    %cst_80 = arith.constant dense<0.000000e+00> : vector<8xf32>
    %153 = vector.multi_reduction <add>, %152, %cst_80 [1] : vector<8x32xf32> to vector<8xf32>
    %154 = vector.shape_cast %153 : vector<8xf32> to vector<8x1xf32>
    %cst_81 = arith.constant 3.200000e+01 : f32
    %155 = vector.broadcast %cst_81 : f32 to vector<8x1xf32>
    %156 = arith.divf %154, %155 : vector<8x1xf32>
    %157 = vector.broadcast %147 : vector<8x1xf32> to vector<8x32xf32>
    %158 = arith.subf %141, %157 : vector<8x32xf32>
    %cst_82 = arith.constant 9.99999996E-13 : f32
    %159 = vector.broadcast %cst_82 : f32 to vector<8x1xf32>
    %160 = arith.addf %156, %159 : vector<8x1xf32>
    %161 = math.rsqrt %160 : vector<8x1xf32>
    %162 = vector.broadcast %161 : vector<8x1xf32> to vector<8x32xf32>
    %163 = arith.mulf %158, %162 : vector<8x32xf32>
    %164 = vector.broadcast %142 : vector<1x32xf32> to vector<8x32xf32>
    %165 = arith.mulf %163, %164 : vector<8x32xf32>
    %166 = vector.broadcast %143 : vector<1x32xf32> to vector<8x32xf32>
    %167 = arith.addf %165, %166 : vector<8x32xf32>
    %168 = arith.truncf %167 : vector<8x32xf32> to vector<8x32xbf16>
    %c0_83 = arith.constant 0 : index
    %c0_84 = arith.constant 0 : index
    %c0_85 = arith.constant 0 : index
    %169 = vector.load %arg20[%c0_83, %c0_84, %c0_85] : memref<1x8x32xbf16, #tpu.memory_space<vmem>>, vector<1x8x32xbf16>
    %170 = vector.shape_cast %169 : vector<1x8x32xbf16> to vector<8x32xbf16>
    %171 = vector.shape_cast %168 : vector<8x32xbf16> to vector<1x8x32xbf16>
    tpu.vector_store %arg20[%c0_83, %c0_84, %c0_85], %171 {strides = array<i32>} : memref<1x8x32xbf16, #tpu.memory_space<vmem>>, vector<1x8x32xbf16>,
    return
  }
  func.func @transform_0(%arg0: i32, %arg1: i32) -> (i32, i32, i32) {
    %c0_i32 = arith.constant 0 : i32
    %c0_i32_0 = arith.constant 0 : i32
    %c0_i32_1 = arith.constant 0 : i32
    return %arg0, %c0_i32, %c0_i32_0 : i32, i32, i32
  }
  func.func @transform_1(%arg0: i32, %arg1: i32) -> (i32, i32, i32) {
    %c0_i32 = arith.constant 0 : i32
    %c0_i32_0 = arith.constant 0 : i32
    %c0_i32_1 = arith.constant 0 : i32
    return %arg0, %c0_i32, %c0_i32_0 : i32, i32, i32
  }
  func.func @transform_2(%arg0: i32, %arg1: i32) -> (i32, i32) {
    %c0_i32 = arith.constant 0 : i32
    %c0_i32_0 = arith.constant 0 : i32
    %c0_i32_1 = arith.constant 0 : i32
    return %c0_i32, %c0_i32_0 : i32, i32
  }
  func.func @transform_3(%arg0: i32, %arg1: i32) -> (i32, i32) {
    %c0_i32 = arith.constant 0 : i32
    %c0_i32_0 = arith.constant 0 : i32
    %c0_i32_1 = arith.constant 0 : i32
    return %c0_i32, %c0_i32_0 : i32, i32
  }
  func.func @transform_4(%arg0: i32, %arg1: i32) -> (i32, i32) {
    %c0_i32 = arith.constant 0 : i32
    %c0_i32_0 = arith.constant 0 : i32
    %c0_i32_1 = arith.constant 0 : i32
    return %c0_i32, %c0_i32_0 : i32, i32
  }
  func.func @transform_5(%arg0: i32, %arg1: i32) -> (i32, i32) {
    %c0_i32 = arith.constant 0 : i32
    %c0_i32_0 = arith.constant 0 : i32
    %c0_i32_1 = arith.constant 0 : i32
    return %c0_i32, %c0_i32_0 : i32, i32
  }
  func.func @transform_6(%arg0: i32, %arg1: i32) -> (i32, i32) {
    %c0_i32 = arith.constant 0 : i32
    %c0_i32_0 = arith.constant 0 : i32
    %c0_i32_1 = arith.constant 0 : i32
    return %c0_i32, %c0_i32_0 : i32, i32
  }
  func.func @transform_7(%arg0: i32, %arg1: i32) -> (i32, i32) {
    %c0_i32 = arith.constant 0 : i32
    %c0_i32_0 = arith.constant 0 : i32
    %c0_i32_1 = arith.constant 0 : i32
    return %c0_i32, %c0_i32_0 : i32, i32
  }
  func.func @transform_8(%arg0: i32, %arg1: i32) -> (i32, i32, i32) {
    %c0_i32 = arith.constant 0 : i32
    %c0_i32_0 = arith.constant 0 : i32
    %c0_i32_1 = arith.constant 0 : i32
    %c0_i32_2 = arith.constant 0 : i32
    return %c0_i32, %c0_i32_0, %c0_i32_1 : i32, i32, i32
  }
  func.func @transform_9(%arg0: i32, %arg1: i32) -> (i32, i32) {
    %c0_i32 = arith.constant 0 : i32
    %c0_i32_0 = arith.constant 0 : i32
    %c0_i32_1 = arith.constant 0 : i32
    return %c0_i32, %c0_i32_0 : i32, i32
  }
  func.func @transform_10(%arg0: i32, %arg1: i32) -> (i32, i32) {
    %c0_i32 = arith.constant 0 : i32
    %c0_i32_0 = arith.constant 0 : i32
    %c0_i32_1 = arith.constant 0 : i32
    return %c0_i32, %c0_i32_0 : i32, i32
  }
  func.func @transform_11(%arg0: i32, %arg1: i32) -> (i32, i32) {
    %c0_i32 = arith.constant 0 : i32
    %c0_i32_0 = arith.constant 0 : i32
    %c0_i32_1 = arith.constant 0 : i32
    return %c0_i32, %c0_i32_0 : i32, i32
  }
  func.func @transform_12(%arg0: i32, %arg1: i32) -> (i32, i32) {
    %c0_i32 = arith.constant 0 : i32
    %c0_i32_0 = arith.constant 0 : i32
    %c0_i32_1 = arith.constant 0 : i32
    return %c0_i32, %c0_i32_0 : i32, i32
  }
  func.func @transform_13(%arg0: i32, %arg1: i32) -> (i32, i32) {
    %c0_i32 = arith.constant 0 : i32
    %c0_i32_0 = arith.constant 0 : i32
    %c0_i32_1 = arith.constant 0 : i32
    return %c0_i32, %c0_i32_0 : i32, i32
  }
  func.func @transform_14(%arg0: i32, %arg1: i32) -> (i32, i32) {
    %c0_i32 = arith.constant 0 : i32
    %c0_i32_0 = arith.constant 0 : i32
    %c0_i32_1 = arith.constant 0 : i32
    return %c0_i32, %c0_i32_0 : i32, i32
  }
  func.func @transform_15(%arg0: i32, %arg1: i32) -> (i32, i32) {
    %c0_i32 = arith.constant 0 : i32
    %c0_i32_0 = arith.constant 0 : i32
    %c0_i32_1 = arith.constant 0 : i32
    return %c0_i32, %c0_i32_0 : i32, i32
  }
  func.func @transform_16(%arg0: i32, %arg1: i32) -> (i32, i32) {
    %c0_i32 = arith.constant 0 : i32
    %c0_i32_0 = arith.constant 0 : i32
    %c0_i32_1 = arith.constant 0 : i32
    return %c0_i32, %c0_i32_0 : i32, i32
  }
  func.func @transform_17(%arg0: i32, %arg1: i32) -> (i32, i32) {
    %c0_i32 = arith.constant 0 : i32
    %c0_i32_0 = arith.constant 0 : i32
    %c0_i32_1 = arith.constant 0 : i32
    return %c0_i32, %c0_i32_0 : i32, i32
  }
  func.func @transform_18(%arg0: i32, %arg1: i32) -> (i32, i32, i32) {
    %c0_i32 = arith.constant 0 : i32
    %c0_i32_0 = arith.constant 0 : i32
    return %arg0, %arg1, %c0_i32 : i32, i32, i32
  }
}

</mosaic_0001>

<llo_original>
// kernel: tpu_custom_call.1
$region0: #{tpu_custom_call.1}
  #allocation0 [shape = 'u32[]', space=smem, size = 0x4, offset = 0x4, fixed_abs, tag = 'smem constant byte address 0x4 - core index']
  #allocation1 [shape = 'u32[144,128]{1,0:T(1,128)}', space=vmem, size = 0x12000, scoped, tag = 'internal scratch']
  #allocation2 [shape = 'bf16[4,8,8]{2,1,0:T(8,128)(2,1)}', space=vmem, size = 0x2000, scoped, tag = 'scratch operand']
  #allocation3 [shape = 'bf16[4,8,8]{2,1,0:T(8,128)(2,1)}', space=vmem, size = 0x2000, scoped, tag = 'scratch operand']
  #allocation4 [shape = 'bf16[4,8,8]{2,1,0:T(8,128)(2,1)}', space=vmem, size = 0x2000, scoped, tag = 'scratch operand']
  %s0 = inlined_call_operand.hbm [shape: bf16[2,8,32], index: 0, kind: input, shape index: {}]
  %s1 = inlined_call_operand.vmem [shape: f32[2,1,8], index: 1, kind: input, shape index: {}]
  %s2 = inlined_call_operand.vmem [shape: bf16[32,32], index: 2, kind: input, shape index: {}]
  %s3 = inlined_call_operand.hbm [shape: f32[1,32], index: 3, kind: input, shape index: {}]
  %s4 = inlined_call_operand.vmem [shape: bf16[32,32], index: 4, kind: input, shape index: {}]
  %s5 = inlined_call_operand.hbm [shape: f32[1,32], index: 5, kind: input, shape index: {}]
  %s6 = inlined_call_operand.vmem [shape: bf16[32,32], index: 6, kind: input, shape index: {}]
  %s7 = inlined_call_operand.hbm [shape: f32[1,32], index: 7, kind: input, shape index: {}]
  %s8 = inlined_call_operand.hbm [shape: bf16[4,8,32], index: 8, kind: input, shape index: {}]
  %s9 = inlined_call_operand.hbm [shape: f32[1,32], index: 9, kind: input, shape index: {}]
  %s10 = inlined_call_operand.vmem [shape: f32[1,32], index: 10, kind: input, shape index: {}]
  %s11 = inlined_call_operand.vmem [shape: f32[1,32], index: 11, kind: input, shape index: {}]
  %s12 = inlined_call_operand.vmem [shape: bf16[32,64], index: 12, kind: input, shape index: {}]
  %s13 = inlined_call_operand.vmem [shape: f32[1,64], index: 13, kind: input, shape index: {}]
  %s14 = inlined_call_operand.vmem [shape: bf16[64,32], index: 14, kind: input, shape index: {}]
  %s15 = inlined_call_operand.vmem [shape: f32[1,32], index: 15, kind: input, shape index: {}]
  %s16 = inlined_call_operand.vmem [shape: f32[1,32], index: 16, kind: input, shape index: {}]
  %s17 = inlined_call_operand.vmem [shape: f32[1,32], index: 17, kind: input, shape index: {}]
  %s18 = inlined_call_operand.hbm [shape: bf16[2,8,32], index: 18, kind: output, shape index: {}]
  %s19 = sld [smem:[#allocation0]]
  $region133: #{tpu_custom_call.1} parent=0
    _
  %s21 = ssub.s32 1, %s19
  %s22 = scalar_select 0, %s21, %s19
  $region1: #{tpu_custom_call.1} parent=0
    #allocation5 [shape = 'u8[4096]{0}', space=vmem, size = 0x1000, scoped, tag = 'input window, operand 0']
    #allocation6 [shape = 's32[2]{0}', space=sflag, size = 0x8, scoped, tag = 'scoped memory for tpu_custom_call.1']
    #allocation7 [shape = 's32[2]{0}', space=sflag, size = 0x8, scoped, tag = 'scoped memory for tpu_custom_call.1']
    #allocation8 [shape = 'u8[512]{0}', space=vmem, size = 0x400, scoped, tag = 'input window, operand 3, single buffered']
    #allocation9 [shape = 's32[1]{0}', space=sflag, size = 0x4, scoped, tag = 'scoped memory for tpu_custom_call.1']
    #allocation10 [shape = 'u8[512]{0}', space=vmem, size = 0x400, scoped, tag = 'input window, operand 5, single buffered']
    #allocation11 [shape = 'u8[512]{0}', space=vmem, size = 0x400, scoped, tag = 'input window, operand 7, single buffered']
    #allocation12 [shape = 's32[1]{0}', space=sflag, size = 0x4, scoped, tag = 'scoped memory for tpu_custom_call.1']
    #allocation13 [shape = 'u8[8192]{0}', space=vmem, size = 0x2000, scoped, tag = 'input window, operand 8, single buffered']
    #allocation14 [shape = 'u8[512]{0}', space=vmem, size = 0x400, scoped, tag = 'input window, operand 9, single buffered']
    #allocation15 [shape = 's32[1]{0}', space=sflag, size = 0x4, scoped, tag = 'scoped memory for tpu_custom_call.1']
    #allocation16 [shape = 'u8[4096]{0}', space=vmem, size = 0x1000, scoped, tag = 'output window, operand 0']
    %23 = vsyncpa [#allocation6], 0
    %s24 = scalar_lea.sflag [#allocation6], 1
    %25 = vsyncpa %s24, 0
    %26 = vsyncpa [#allocation9], 0
    %27 = vsyncpa [#allocation12], 0
    %28 = vsyncpa [#allocation15], 0
    %29 = vsyncpa [#allocation7], 0
    %s30 = scalar_lea.sflag [#allocation7], 1
    %31 = vsyncpa %s30, 0
    loop: start=0, step=1, limit=4
    $region2: #{tpu_custom_call.1} parent=1 // loop_pre_header
      _
    $region3: #{tpu_custom_call.1} parent=1 // loop_header
      %s33 = sphi 0, %s37
      %p34 = scmp.ge.s32.totalorder %s33, 4
      %s40 = sphi 0, %s52
      %s41 = sphi 0, %s48
      %s42 = sphi 0, %s40
      %s43 = sphi 0, %s41
      %s44 = sphi 0, %s42
      %s45 = sphi 0, %s43
      %s55 = sphi 0, %s57
      %s58 = sphi 0, %s55
      %s59 = sphi 0, %s58
      %s75 = sphi 0, %s59
      %s81 = sphi 0, %s83
      %s84 = sphi 0, %s81
      %s85 = sphi 0, %s84
      %s101 = sphi 0, %s85
      %s105 = sphi 0, %s105
      %s107 = sphi 0, %s105
      %s108 = sphi 0, %s107
      %s122 = sphi 0, %s108
      %s126 = sphi 0, %s126
      %s128 = sphi 0, %s126
      %s129 = sphi 0, %s128
      %s143 = sphi 0, %s129
      %s147 = sphi 0, %s147
      %s149 = sphi 0, %s147
      %s150 = sphi 0, %s149
      %s164 = sphi 0, %s150
      %s168 = sphi 0, %s168
      %s170 = sphi 0, %s168
      %s171 = sphi 0, %s170
      %s185 = sphi 0, %s171
      %s189 = sphi 0, %s189
      %s191 = sphi 0, %s189
      %s192 = sphi 0, %s191
      %s206 = sphi 0, %s192
      %s210 = sphi 0, %s210
      %s212 = sphi 0, %s210
      %s213 = sphi 0, %s212
      %s227 = sphi 0, %s213
      %s231 = sphi 0, %s231
      %s233 = sphi 0, %s231
      %s234 = sphi 0, %s233
      %s248 = sphi 0, %s234
      %s252 = sphi 0, %s252
      %s254 = sphi 0, %s252
      %s255 = sphi 0, %s254
      %s269 = sphi 0, %s255
      %s273 = sphi 0, %s273
      %s275 = sphi 0, %s273
      %s276 = sphi 0, %s275
      %s290 = sphi 0, %s276
      %s294 = sphi 0, %s294
      %s296 = sphi 0, %s294
      %s297 = sphi 0, %s296
      %s311 = sphi 0, %s297
      %s315 = sphi 0, %s315
      %s317 = sphi 0, %s315
      %s318 = sphi 0, %s317
      %s332 = sphi 0, %s318
      %s336 = sphi 0, %s336
      %s338 = sphi 0, %s336
      %s339 = sphi 0, %s338
      %s353 = sphi 0, %s339
      %s357 = sphi 0, %s357
      %s359 = sphi 0, %s357
      %s360 = sphi 0, %s359
      %s374 = sphi 0, %s360
      %s378 = sphi 0, %s378
      %s380 = sphi 0, %s378
      %s381 = sphi 0, %s380
      %s395 = sphi 0, %s381
      %s399 = sphi 0, %s399
      %s401 = sphi 0, %s399
      %s402 = sphi 0, %s401
      %s416 = sphi 0, %s402
      %s420 = sphi 0, %s420
      %s422 = sphi 0, %s420
      %s423 = sphi 0, %s422
      %s437 = sphi 0, %s423
      %s445 = sphi 0, %s447
      %s448 = sphi 0, %s445
      %s449 = sphi 0, %s448
      %s465 = sphi 0, %s449
    $region4: #{tpu_custom_call.1} parent=1 // loop_header_branch
      %36 = sbr.rel (%p34) target = $region8
    $region5: #{tpu_custom_call.1} parent=1 // loop_body
      %s38 = ssub.s32 %s33, 1
      %s39 = ssub.s32 %s33, 2
      %s46 = sadd.s32 1, %s41
      %p47 = scmp.ge.s32.totalorder %s46, 1
      %s48 = scalar_select %p47, 0, %s46
      %s49 = sadd.s32 1, %s40
      %s50 = scalar_select %p47, %s49, %s40
      %p51 = scmp.ge.s32.totalorder %s50, 2
      %s52 = scalar_select %p51, 0, %s50
      %s53 = ssub.s32 %s40, %s52
      %p54 = scmp.eq.s32.totalorder %s53, 0
      %s56 = sadd.s32 %s55, 1
      %s57 = scalar_select %p54, %s55, %s56
      %p60 = pneg %p54
      %p61 = scmp.eq.s32.totalorder %s33, 1
      %p62 = por %p60, %p61
      %p63 = scmp.ne.s32.totalorder %s55, %s58
      %p64 = scmp.eq.s32.totalorder %s33, 0
      %p65 = por %p63, %p64
      %p66 = scmp.ne.s32.totalorder %s55, %s58
      %p67 = scmp.eq.s32.totalorder %s38, 1
      %p68 = por %p66, %p67
      %p69 = scmp.ne.s32.totalorder %s58, %s59
      %p70 = scmp.eq.s32.totalorder %s38, 0
      %p71 = por %p69, %p70
      %p72 = scmp.ne.s32.totalorder %s58, %s59
      %p73 = scmp.eq.s32.totalorder %s39, 1
      %p74 = por %p72, %p73
      %p76 = scmp.ne.s32.totalorder %s59, %s75
      %p77 = scmp.eq.s32.totalorder %s39, 0
      %p78 = por %p76, %p77
      %s79 = ssub.s32 %s40, %s52
      %p80 = scmp.eq.s32.totalorder %s79, 0
      %s82 = sadd.s32 %s81, 1
      %s83 = scalar_select %p80, %s81, %s82
      %p86 = pneg %p80
      %p87 = scmp.eq.s32.totalorder %s33, 1
      %p88 = por %p86, %p87
      %p89 = scmp.ne.s32.totalorder %s81, %s84
      %p90 = scmp.eq.s32.totalorder %s33, 0
      %p91 = por %p89, %p90
      %p92 = scmp.ne.s32.totalorder %s81, %s84
      %p93 = scmp.eq.s32.totalorder %s38, 1
      %p94 = por %p92, %p93
      %p95 = scmp.ne.s32.totalorder %s84, %s85
      %p96 = scmp.eq.s32.totalorder %s38, 0
      %p97 = por %p95, %p96
      %p98 = scmp.ne.s32.totalorder %s84, %s85
      %p99 = scmp.eq.s32.totalorder %s39, 1
      %p100 = por %p98, %p99
      %p102 = scmp.ne.s32.totalorder %s85, %s101
      %p103 = scmp.eq.s32.totalorder %s39, 0
      %p104 = por %p102, %p103
      %s106 = sadd.s32 %s105, 1
      %p109 = scmp.eq.s32.totalorder %s33, 1
      %p110 = scmp.ne.s32.totalorder %s105, %s107
      %p111 = scmp.eq.s32.totalorder %s33, 0
      %p112 = por %p110, %p111
      %p113 = scmp.ne.s32.totalorder %s105, %s107
      %p114 = scmp.eq.s32.totalorder %s38, 1
      %p115 = por %p113, %p114
      %p116 = scmp.ne.s32.totalorder %s107, %s108
      %p117 = scmp.eq.s32.totalorder %s38, 0
      %p118 = por %p116, %p117
      %p119 = scmp.ne.s32.totalorder %s107, %s108
      %p120 = scmp.eq.s32.totalorder %s39, 1
      %p121 = por %p119, %p120
      %p123 = scmp.ne.s32.totalorder %s108, %s122
      %p124 = scmp.eq.s32.totalorder %s39, 0
      %p125 = por %p123, %p124
      %s127 = sadd.s32 %s126, 1
      %p130 = scmp.eq.s32.totalorder %s33, 1
      %p131 = scmp.ne.s32.totalorder %s126, %s128
      %p132 = scmp.eq.s32.totalorder %s33, 0
      %p133 = por %p131, %p132
      %p134 = scmp.ne.s32.totalorder %s126, %s128
      %p135 = scmp.eq.s32.totalorder %s38, 1
      %p136 = por %p134, %p135
      %p137 = scmp.ne.s32.totalorder %s128, %s129
      %p138 = scmp.eq.s32.totalorder %s38, 0
      %p139 = por %p137, %p138
      %p140 = scmp.ne.s32.totalorder %s128, %s129
      %p141 = scmp.eq.s32.totalorder %s39, 1
      %p142 = por %p140, %p141
      %p144 = scmp.ne.s32.totalorder %s129, %s143
      %p145 = scmp.eq.s32.totalorder %s39, 0
      %p146 = por %p144, %p145
      %s148 = sadd.s32 %s147, 1
      %p151 = scmp.eq.s32.totalorder %s33, 1
      %p152 = scmp.ne.s32.totalorder %s147, %s149
      %p153 = scmp.eq.s32.totalorder %s33, 0
      %p154 = por %p152, %p153
      %p155 = scmp.ne.s32.totalorder %s147, %s149
      %p156 = scmp.eq.s32.totalorder %s38, 1
      %p157 = por %p155, %p156
      %p158 = scmp.ne.s32.totalorder %s149, %s150
      %p159 = scmp.eq.s32.totalorder %s38, 0
      %p160 = por %p158, %p159
      %p161 = scmp.ne.s32.totalorder %s149, %s150
      %p162 = scmp.eq.s32.totalorder %s39, 1
      %p163 = por %p161, %p162
      %p165 = scmp.ne.s32.totalorder %s150, %s164
      %p166 = scmp.eq.s32.totalorder %s39, 0
      %p167 = por %p165, %p166
      %s169 = sadd.s32 %s168, 1
      %p172 = scmp.eq.s32.totalorder %s33, 1
      %p173 = scmp.ne.s32.totalorder %s168, %s170
      %p174 = scmp.eq.s32.totalorder %s33, 0
      %p175 = por %p173, %p174
      %p176 = scmp.ne.s32.totalorder %s168, %s170
      %p177 = scmp.eq.s32.totalorder %s38, 1
      %p178 = por %p176, %p177
      %p179 = scmp.ne.s32.totalorder %s170, %s171
      %p180 = scmp.eq.s32.totalorder %s38, 0
      %p181 = por %p179, %p180
      %p182 = scmp.ne.s32.totalorder %s170, %s171
      %p183 = scmp.eq.s32.totalorder %s39, 1
      %p184 = por %p182, %p183
      %p186 = scmp.ne.s32.totalorder %s171, %s185
      %p187 = scmp.eq.s32.totalorder %s39, 0
      %p188 = por %p186, %p187
      %s190 = sadd.s32 %s189, 1
      %p193 = scmp.eq.s32.totalorder %s33, 1
      %p194 = scmp.ne.s32.totalorder %s189, %s191
      %p195 = scmp.eq.s32.totalorder %s33, 0
      %p196 = por %p194, %p195
      %p197 = scmp.ne.s32.totalorder %s189, %s191
      %p198 = scmp.eq.s32.totalorder %s38, 1
      %p199 = por %p197, %p198
      %p200 = scmp.ne.s32.totalorder %s191, %s192
      %p201 = scmp.eq.s32.totalorder %s38, 0
      %p202 = por %p200, %p201
      %p203 = scmp.ne.s32.totalorder %s191, %s192
      %p204 = scmp.eq.s32.totalorder %s39, 1
      %p205 = por %p203, %p204
      %p207 = scmp.ne.s32.totalorder %s192, %s206
      %p208 = scmp.eq.s32.totalorder %s39, 0
      %p209 = por %p207, %p208
      %s211 = sadd.s32 %s210, 1
      %p214 = scmp.eq.s32.totalorder %s33, 1
      %p215 = scmp.ne.s32.totalorder %s210, %s212
      %p216 = scmp.eq.s32.totalorder %s33, 0
      %p217 = por %p215, %p216
      %p218 = scmp.ne.s32.totalorder %s210, %s212
      %p219 = scmp.eq.s32.totalorder %s38, 1
      %p220 = por %p218, %p219
      %p221 = scmp.ne.s32.totalorder %s212, %s213
      %p222 = scmp.eq.s32.totalorder %s38, 0
      %p223 = por %p221, %p222
      %p224 = scmp.ne.s32.totalorder %s212, %s213
      %p225 = scmp.eq.s32.totalorder %s39, 1
      %p226 = por %p224, %p225
      %p228 = scmp.ne.s32.totalorder %s213, %s227
      %p229 = scmp.eq.s32.totalorder %s39, 0
      %p230 = por %p228, %p229
      %s232 = sadd.s32 %s231, 1
      %p235 = scmp.eq.s32.totalorder %s33, 1
      %p236 = scmp.ne.s32.totalorder %s231, %s233
      %p237 = scmp.eq.s32.totalorder %s33, 0
      %p238 = por %p236, %p237
      %p239 = scmp.ne.s32.totalorder %s231, %s233
      %p240 = scmp.eq.s32.totalorder %s38, 1
      %p241 = por %p239, %p240
      %p242 = scmp.ne.s32.totalorder %s233, %s234
      %p243 = scmp.eq.s32.totalorder %s38, 0
      %p244 = por %p242, %p243
      %p245 = scmp.ne.s32.totalorder %s233, %s234
      %p246 = scmp.eq.s32.totalorder %s39, 1
      %p247 = por %p245, %p246
      %p249 = scmp.ne.s32.totalorder %s234, %s248
      %p250 = scmp.eq.s32.totalorder %s39, 0
      %p251 = por %p249, %p250
      %s253 = sadd.s32 %s252, 1
      %p256 = scmp.eq.s32.totalorder %s33, 1
      %p257 = scmp.ne.s32.totalorder %s252, %s254
      %p258 = scmp.eq.s32.totalorder %s33, 0
      %p259 = por %p257, %p258
      %p260 = scmp.ne.s32.totalorder %s252, %s254
      %p261 = scmp.eq.s32.totalorder %s38, 1
      %p262 = por %p260, %p261
      %p263 = scmp.ne.s32.totalorder %s254, %s255
      %p264 = scmp.eq.s32.totalorder %s38, 0
      %p265 = por %p263, %p264
      %p266 = scmp.ne.s32.totalorder %s254, %s255
      %p267 = scmp.eq.s32.totalorder %s39, 1
      %p268 = por %p266, %p267
      %p270 = scmp.ne.s32.totalorder %s255, %s269
      %p271 = scmp.eq.s32.totalorder %s39, 0
      %p272 = por %p270, %p271
      %s274 = sadd.s32 %s273, 1
      %p277 = scmp.eq.s32.totalorder %s33, 1
      %p278 = scmp.ne.s32.totalorder %s273, %s275
      %p279 = scmp.eq.s32.totalorder %s33, 0
      %p280 = por %p278, %p279
      %p281 = scmp.ne.s32.totalorder %s273, %s275
      %p282 = scmp.eq.s32.totalorder %s38, 1
      %p283 = por %p281, %p282
      %p284 = scmp.ne.s32.totalorder %s275, %s276
      %p285 = scmp.eq.s32.totalorder %s38, 0
      %p286 = por %p284, %p285
      %p287 = scmp.ne.s32.totalorder %s275, %s276
      %p288 = scmp.eq.s32.totalorder %s39, 1
      %p289 = por %p287, %p288
      %p291 = scmp.ne.s32.totalorder %s276, %s290
      %p292 = scmp.eq.s32.totalorder %s39, 0
      %p293 = por %p291, %p292
      %s295 = sadd.s32 %s294, 1
      %p298 = scmp.eq.s32.totalorder %s33, 1
      %p299 = scmp.ne.s32.totalorder %s294, %s296
      %p300 = scmp.eq.s32.totalorder %s33, 0
      %p301 = por %p299, %p300
      %p302 = scmp.ne.s32.totalorder %s294, %s296
      %p303 = scmp.eq.s32.totalorder %s38, 1
      %p304 = por %p302, %p303
      %p305 = scmp.ne.s32.totalorder %s296, %s297
      %p306 = scmp.eq.s32.totalorder %s38, 0
      %p307 = por %p305, %p306
      %p308 = scmp.ne.s32.totalorder %s296, %s297
      %p309 = scmp.eq.s32.totalorder %s39, 1
      %p310 = por %p308, %p309
      %p312 = scmp.ne.s32.totalorder %s297, %s311
      %p313 = scmp.eq.s32.totalorder %s39, 0
      %p314 = por %p312, %p313
      %s316 = sadd.s32 %s315, 1
      %p319 = scmp.eq.s32.totalorder %s33, 1
      %p320 = scmp.ne.s32.totalorder %s315, %s317
      %p321 = scmp.eq.s32.totalorder %s33, 0
      %p322 = por %p320, %p321
      %p323 = scmp.ne.s32.totalorder %s315, %s317
      %p324 = scmp.eq.s32.totalorder %s38, 1
      %p325 = por %p323, %p324
      %p326 = scmp.ne.s32.totalorder %s317, %s318
      %p327 = scmp.eq.s32.totalorder %s38, 0
      %p328 = por %p326, %p327
      %p329 = scmp.ne.s32.totalorder %s317, %s318
      %p330 = scmp.eq.s32.totalorder %s39, 1
      %p331 = por %p329, %p330
      %p333 = scmp.ne.s32.totalorder %s318, %s332
      %p334 = scmp.eq.s32.totalorder %s39, 0
      %p335 = por %p333, %p334
      %s337 = sadd.s32 %s336, 1
      %p340 = scmp.eq.s32.totalorder %s33, 1
      %p341 = scmp.ne.s32.totalorder %s336, %s338
      %p342 = scmp.eq.s32.totalorder %s33, 0
      %p343 = por %p341, %p342
      %p344 = scmp.ne.s32.totalorder %s336, %s338
      %p345 = scmp.eq.s32.totalorder %s38, 1
      %p346 = por %p344, %p345
      %p347 = scmp.ne.s32.totalorder %s338, %s339
      %p348 = scmp.eq.s32.totalorder %s38, 0
      %p349 = por %p347, %p348
      %p350 = scmp.ne.s32.totalorder %s338, %s339
      %p351 = scmp.eq.s32.totalorder %s39, 1
      %p352 = por %p350, %p351
      %p354 = scmp.ne.s32.totalorder %s339, %s353
      %p355 = scmp.eq.s32.totalorder %s39, 0
      %p356 = por %p354, %p355
      %s358 = sadd.s32 %s357, 1
      %p361 = scmp.eq.s32.totalorder %s33, 1
      %p362 = scmp.ne.s32.totalorder %s357, %s359
      %p363 = scmp.eq.s32.totalorder %s33, 0
      %p364 = por %p362, %p363
      %p365 = scmp.ne.s32.totalorder %s357, %s359
      %p366 = scmp.eq.s32.totalorder %s38, 1
      %p367 = por %p365, %p366
      %p368 = scmp.ne.s32.totalorder %s359, %s360
      %p369 = scmp.eq.s32.totalorder %s38, 0
      %p370 = por %p368, %p369
      %p371 = scmp.ne.s32.totalorder %s359, %s360
      %p372 = scmp.eq.s32.totalorder %s39, 1
      %p373 = por %p371, %p372
      %p375 = scmp.ne.s32.totalorder %s360, %s374
      %p376 = scmp.eq.s32.totalorder %s39, 0
      %p377 = por %p375, %p376
      %s379 = sadd.s32 %s378, 1
      %p382 = scmp.eq.s32.totalorder %s33, 1
      %p383 = scmp.ne.s32.totalorder %s378, %s380
      %p384 = scmp.eq.s32.totalorder %s33, 0
      %p385 = por %p383, %p384
      %p386 = scmp.ne.s32.totalorder %s378, %s380
      %p387 = scmp.eq.s32.totalorder %s38, 1
      %p388 = por %p386, %p387
      %p389 = scmp.ne.s32.totalorder %s380, %s381
      %p390 = scmp.eq.s32.totalorder %s38, 0
      %p391 = por %p389, %p390
      %p392 = scmp.ne.s32.totalorder %s380, %s381
      %p393 = scmp.eq.s32.totalorder %s39, 1
      %p394 = por %p392, %p393
      %p396 = scmp.ne.s32.totalorder %s381, %s395
      %p397 = scmp.eq.s32.totalorder %s39, 0
      %p398 = por %p396, %p397
      %s400 = sadd.s32 %s399, 1
      %p403 = scmp.eq.s32.totalorder %s33, 1
      %p404 = scmp.ne.s32.totalorder %s399, %s401
      %p405 = scmp.eq.s32.totalorder %s33, 0
      %p406 = por %p404, %p405
      %p407 = scmp.ne.s32.totalorder %s399, %s401
      %p408 = scmp.eq.s32.totalorder %s38, 1
      %p409 = por %p407, %p408
      %p410 = scmp.ne.s32.totalorder %s401, %s402
      %p411 = scmp.eq.s32.totalorder %s38, 0
      %p412 = por %p410, %p411
      %p413 = scmp.ne.s32.totalorder %s401, %s402
      %p414 = scmp.eq.s32.totalorder %s39, 1
      %p415 = por %p413, %p414
      %p417 = scmp.ne.s32.totalorder %s402, %s416
      %p418 = scmp.eq.s32.totalorder %s39, 0
      %p419 = por %p417, %p418
      %s421 = sadd.s32 %s420, 1
      %p424 = scmp.eq.s32.totalorder %s33, 1
      %p425 = scmp.ne.s32.totalorder %s420, %s422
      %p426 = scmp.eq.s32.totalorder %s33, 0
      %p427 = por %p425, %p426
      %p428 = scmp.ne.s32.totalorder %s420, %s422
      %p429 = scmp.eq.s32.totalorder %s38, 1
      %p430 = por %p428, %p429
      %p431 = scmp.ne.s32.totalorder %s422, %s423
      %p432 = scmp.eq.s32.totalorder %s38, 0
      %p433 = por %p431, %p432
      %p434 = scmp.ne.s32.totalorder %s422, %s423
      %p435 = scmp.eq.s32.totalorder %s39, 1
      %p436 = por %p434, %p435
      %p438 = scmp.ne.s32.totalorder %s423, %s437
      %p439 = scmp.eq.s32.totalorder %s39, 0
      %p440 = por %p438, %p439
      %s441 = ssub.s32 %s40, %s52
      %s442 = ssub.s32 %s41, %s48
      %s443 = sor.u32 %s441, %s442
      %p444 = scmp.eq.s32.totalorder %s443, 0
      %s446 = sadd.s32 %s445, 1
      %s447 = scalar_select %p444, %s445, %s446
      %p450 = pneg %p444
      %p451 = scmp.eq.s32.totalorder %s33, 1
      %p452 = por %p450, %p451
      %p453 = scmp.ne.s32.totalorder %s445, %s448
      %p454 = scmp.eq.s32.totalorder %s33, 0
      %p455 = por %p453, %p454
      %p456 = scmp.ne.s32.totalorder %s445, %s448
      %p457 = scmp.eq.s32.totalorder %s38, 1
      %p458 = por %p456, %p457
      %p459 = scmp.ne.s32.totalorder %s448, %s449
      %p460 = scmp.eq.s32.totalorder %s38, 0
      %p461 = por %p459, %p460
      %p462 = scmp.ne.s32.totalorder %s448, %s449
      %p463 = scmp.eq.s32.totalorder %s39, 1
      %p464 = por %p462, %p463
      %p466 = scmp.ne.s32.totalorder %s449, %s465
      %p467 = scmp.eq.s32.totalorder %s39, 0
      %p468 = por %p466, %p467
      %p469 = scmp.le.s32.totalorder 1, %s33
      %p470 = scmp.lt.s32.totalorder %s33, 3
      %p471 = pnand %p469, %p470
      %p472 = pneg %p471
      // Predicated region
      $region9: #{tpu_custom_call.1} parent=5 // pred_check
        _
      $region10: #{tpu_custom_call.1} parent=5 // pred_check_branch
        %474 = sbr.rel (%p471) target = $region12
      $region11: #{tpu_custom_call.1} parent=5 // pred_region
        %s475 = ssub.s32 %s33, 1
        // Predicated region
        $region13: #{tpu_custom_call.1} parent=11 // pred_check
          %p476 = pneg %p118
        $region14: #{tpu_custom_call.1} parent=11 // pred_check_branch
          %478 = sbr.rel (%p476) target = $region16
        $region15: #{tpu_custom_call.1} parent=11 // pred_region
          _
        $region16: #{tpu_custom_call.1} parent=11 // pred_fallthru
          _
        // Predicated region
        $region17: #{tpu_custom_call.1} parent=11 // pred_check
          %p479 = pneg %p139
        $region18: #{tpu_custom_call.1} parent=11 // pred_check_branch
          %481 = sbr.rel (%p479) target = $region20
        $region19: #{tpu_custom_call.1} parent=11 // pred_region
          %s483 = ssub.s32 16, 16
          %484 = vsyncadd [#allocation9], %s483
          %s486 = sshll.u32 [#allocation8], 4
          %s487 = int_to_ptr.vmem [resolvable:$true] %s486
          %489 = dma.hbm_to_vmem [thread:$0]  %s3, 16, %s487, [#allocation9]
        $region20: #{tpu_custom_call.1} parent=11 // pred_fallthru
          _
        // Predicated region
        $region21: #{tpu_custom_call.1} parent=11 // pred_check
          %p490 = pneg %p160
        $region22: #{tpu_custom_call.1} parent=11 // pred_check_branch
          %492 = sbr.rel (%p490) target = $region24
        $region23: #{tpu_custom_call.1} parent=11 // pred_region
          _
        $region24: #{tpu_custom_call.1} parent=11 // pred_fallthru
          _
        // Predicated region
        $region25: #{tpu_custom_call.1} parent=11 // pred_check
          %p493 = pneg %p181
        $region26: #{tpu_custom_call.1} parent=11 // pred_check_branch
          %495 = sbr.rel (%p493) target = $region28
        $region27: #{tpu_custom_call.1} parent=11 // pred_region
          %s497 = ssub.s32 16, 16
          %498 = vsyncadd [#allocation9], %s497
          %s500 = sshll.u32 [#allocation10], 4
          %s501 = int_to_ptr.vmem [resolvable:$true] %s500
          %503 = dma.hbm_to_vmem [thread:$0]  %s5, 16, %s501, [#allocation9]
        $region28: #{tpu_custom_call.1} parent=11 // pred_fallthru
          _
        // Predicated region
        $region29: #{tpu_custom_call.1} parent=11 // pred_check
          %p504 = pneg %p202
        $region30: #{tpu_custom_call.1} parent=11 // pred_check_branch
          %506 = sbr.rel (%p504) target = $region32
        $region31: #{tpu_custom_call.1} parent=11 // pred_region
          _
        $region32: #{tpu_custom_call.1} parent=11 // pred_fallthru
          _
        // Predicated region
        $region33: #{tpu_custom_call.1} parent=11 // pred_check
          %p507 = pneg %p223
        $region34: #{tpu_custom_call.1} parent=11 // pred_check_branch
          %509 = sbr.rel (%p507) target = $region36
        $region35: #{tpu_custom_call.1} parent=11 // pred_region
          %s511 = ssub.s32 16, 16
          %512 = vsyncadd [#allocation12], %s511
          %s514 = sshll.u32 [#allocation11], 4
          %s515 = int_to_ptr.vmem [resolvable:$true] %s514
          %517 = dma.hbm_to_vmem [thread:$0]  %s7, 16, %s515, [#allocation12]
        $region36: #{tpu_custom_call.1} parent=11 // pred_fallthru
          _
        // Predicated region
        $region37: #{tpu_custom_call.1} parent=11 // pred_check
          %p518 = pneg %p244
        $region38: #{tpu_custom_call.1} parent=11 // pred_check_branch
          %520 = sbr.rel (%p518) target = $region40
        $region39: #{tpu_custom_call.1} parent=11 // pred_region
          %s522 = ssub.s32 256, 256
          %523 = vsyncadd [#allocation12], %s522
          %s524 = sshll.u32 [#allocation13], 4
          %s525 = int_to_ptr.vmem [resolvable:$true] %s524
          %530 = dma.hbm_to_vmem [thread:$0]  %s8, 256, %s525, [#allocation12], 64, 64, 4
        $region40: #{tpu_custom_call.1} parent=11 // pred_fallthru
          _
        // Predicated region
        $region41: #{tpu_custom_call.1} parent=11 // pred_check
          %p531 = pneg %p265
        $region42: #{tpu_custom_call.1} parent=11 // pred_check_branch
          %533 = sbr.rel (%p531) target = $region44
        $region43: #{tpu_custom_call.1} parent=11 // pred_region
          %s535 = ssub.s32 16, 16
          %536 = vsyncadd [#allocation15], %s535
          %s538 = sshll.u32 [#allocation14], 4
          %s539 = int_to_ptr.vmem [resolvable:$true] %s538
          %541 = dma.hbm_to_vmem [thread:$0]  %s9, 16, %s539, [#allocation15]
        $region44: #{tpu_custom_call.1} parent=11 // pred_fallthru
          _
        // Predicated region
        $region45: #{tpu_custom_call.1} parent=11 // pred_check
          %p542 = pneg %p286
        $region46: #{tpu_custom_call.1} parent=11 // pred_check_branch
          %544 = sbr.rel (%p542) target = $region48
        $region47: #{tpu_custom_call.1} parent=11 // pred_region
          _
        $region48: #{tpu_custom_call.1} parent=11 // pred_fallthru
          _
        // Predicated region
        $region49: #{tpu_custom_call.1} parent=11 // pred_check
          %p545 = pneg %p307
        $region50: #{tpu_custom_call.1} parent=11 // pred_check_branch
          %547 = sbr.rel (%p545) target = $region52
        $region51: #{tpu_custom_call.1} parent=11 // pred_region
          _
        $region52: #{tpu_custom_call.1} parent=11 // pred_fallthru
          _
        // Predicated region
        $region53: #{tpu_custom_call.1} parent=11 // pred_check
          %p548 = pneg %p328
        $region54: #{tpu_custom_call.1} parent=11 // pred_check_branch
          %550 = sbr.rel (%p548) target = $region56
        $region55: #{tpu_custom_call.1} parent=11 // pred_region
          _
        $region56: #{tpu_custom_call.1} parent=11 // pred_fallthru
          _
        // Predicated region
        $region57: #{tpu_custom_call.1} parent=11 // pred_check
          %p551 = pneg %p349
        $region58: #{tpu_custom_call.1} parent=11 // pred_check_branch
          %553 = sbr.rel (%p551) target = $region60
        $region59: #{tpu_custom_call.1} parent=11 // pred_region
          _
        $region60: #{tpu_custom_call.1} parent=11 // pred_fallthru
          _
        // Predicated region
        $region61: #{tpu_custom_call.1} parent=11 // pred_check
          %p554 = pneg %p370
        $region62: #{tpu_custom_call.1} parent=11 // pred_check_branch
          %556 = sbr.rel (%p554) target = $region64
        $region63: #{tpu_custom_call.1} parent=11 // pred_region
          _
        $region64: #{tpu_custom_call.1} parent=11 // pred_fallthru
          _
        // Predicated region
        $region65: #{tpu_custom_call.1} parent=11 // pred_check
          %p557 = pneg %p391
        $region66: #{tpu_custom_call.1} parent=11 // pred_check_branch
          %559 = sbr.rel (%p557) target = $region68
        $region67: #{tpu_custom_call.1} parent=11 // pred_region
          _
        $region68: #{tpu_custom_call.1} parent=11 // pred_fallthru
          _
        // Predicated region
        $region69: #{tpu_custom_call.1} parent=11 // pred_check
          %p560 = pneg %p412
        $region70: #{tpu_custom_call.1} parent=11 // pred_check_branch
          %562 = sbr.rel (%p560) target = $region72
        $region71: #{tpu_custom_call.1} parent=11 // pred_region
          _
        $region72: #{tpu_custom_call.1} parent=11 // pred_fallthru
          _
        // Predicated region
        $region73: #{tpu_custom_call.1} parent=11 // pred_check
          %p563 = pneg %p433
        $region74: #{tpu_custom_call.1} parent=11 // pred_check_branch
          %565 = sbr.rel (%p563) target = $region76
        $region75: #{tpu_custom_call.1} parent=11 // pred_region
          _
        $region76: #{tpu_custom_call.1} parent=11 // pred_fallthru
          _
      $region12: #{tpu_custom_call.1} parent=5 // pred_fallthru
        _
      %p566 = scmp.lt.s32.totalorder %s33, 2
      // Predicated region
      $region77: #{tpu_custom_call.1} parent=5 // pred_check
        %p567 = pneg %p566
      $region78: #{tpu_custom_call.1} parent=5 // pred_check_branch
        %569 = sbr.rel (%p567) target = $region80
      $region79: #{tpu_custom_call.1} parent=5 // pred_region
        // Predicated region
        $region81: #{tpu_custom_call.1} parent=79 // pred_check
          %p570 = pneg %p65
        $region82: #{tpu_custom_call.1} parent=79 // pred_check_branch
          %572 = sbr.rel (%p570) target = $region84
        $region83: #{tpu_custom_call.1} parent=79 // pred_region
          %s573 = sand.u32 %s55, 1
          %s574 = scalar_lea.sflag [#allocation6], %s573
          %s575 = sand.u32 %s55, 1
          %s576 = smul.addr %s575, 4
          %s577 = scalar_lea.vmem [#allocation5], %s576
          %s579 = ssub.s32 64, 64
          %580 = vsyncadd %s574, %s579
          %s581 = smul.addr %s40, 64
          %s582 = scalar_lea.hbm %s0, %s581
          %s584 = sshll.u32 %s577, 4
          %s585 = int_to_ptr.vmem [resolvable:$true] %s584
          %587 = dma.hbm_to_vmem [thread:$0]  %s582, 64, %s585, %s574
        $region84: #{tpu_custom_call.1} parent=79 // pred_fallthru
          _
        // Predicated region
        $region85: #{tpu_custom_call.1} parent=79 // pred_check
          %p588 = pneg %p91
        $region86: #{tpu_custom_call.1} parent=79 // pred_check_branch
          %590 = sbr.rel (%p588) target = $region88
        $region87: #{tpu_custom_call.1} parent=79 // pred_region
          %p591 = scmp.lt.s32.totalorder %s40, 1
          %s592 = scalar_select %p591, %s40, 1
          %s593 = scalar_lea.vmem %s1, %s592
        $region88: #{tpu_custom_call.1} parent=79 // pred_fallthru
          _
      $region80: #{tpu_custom_call.1} parent=5 // pred_fallthru
        _
      %p594 = scmp.le.s32.totalorder 1, %s33
      %p595 = scmp.lt.s32.totalorder %s33, 3
      %p596 = pnand %p594, %p595
      %p597 = pneg %p596
      // Predicated region
      $region89: #{tpu_custom_call.1} parent=5 // pred_check
        _
      $region90: #{tpu_custom_call.1} parent=5 // pred_check_branch
        %599 = sbr.rel (%p596) target = $region92
      $region91: #{tpu_custom_call.1} parent=5 // pred_region
        %s600 = ssub.s32 %s33, 1
        %s601 = sand.u32 %s58, 1
        %s602 = scalar_lea.sflag [#allocation6], %s601
        %s603 = sand.u32 %s58, 1
        %s604 = smul.addr %s603, 4
        %s605 = scalar_lea.vmem [#allocation5], %s604
        // Predicated region
        $region93: #{tpu_custom_call.1} parent=91 // pred_check
          %p606 = pneg %p71
        $region94: #{tpu_custom_call.1} parent=91 // pred_check_branch
          %608 = sbr.rel (%p606) target = $region96
        $region95: #{tpu_custom_call.1} parent=91 // pred_region
          %609 = dma.done %s602, 64
        $region96: #{tpu_custom_call.1} parent=91 // pred_fallthru
          _
        // Predicated region
        $region97: #{tpu_custom_call.1} parent=91 // pred_check
          %p610 = pneg %p139
        $region98: #{tpu_custom_call.1} parent=91 // pred_check_branch
          %612 = sbr.rel (%p610) target = $region100
        $region99: #{tpu_custom_call.1} parent=91 // pred_region
          %613 = dma.done [#allocation9], 16
        $region100: #{tpu_custom_call.1} parent=91 // pred_fallthru
          _
        // Predicated region
        $region101: #{tpu_custom_call.1} parent=91 // pred_check
          %p614 = pneg %p181
        $region102: #{tpu_custom_call.1} parent=91 // pred_check_branch
          %616 = sbr.rel (%p614) target = $region104
        $region103: #{tpu_custom_call.1} parent=91 // pred_region
          %617 = dma.done [#allocation9], 16
        $region104: #{tpu_custom_call.1} parent=91 // pred_fallthru
          _
        // Predicated region
        $region105: #{tpu_custom_call.1} parent=91 // pred_check
          %p618 = pneg %p223
        $region106: #{tpu_custom_call.1} parent=91 // pred_check_branch
          %620 = sbr.rel (%p618) target = $region108
        $region107: #{tpu_custom_call.1} parent=91 // pred_region
          %621 = dma.done [#allocation12], 16
        $region108: #{tpu_custom_call.1} parent=91 // pred_fallthru
          _
        // Predicated region
        $region109: #{tpu_custom_call.1} parent=91 // pred_check
          %p622 = pneg %p244
        $region110: #{tpu_custom_call.1} parent=91 // pred_check_branch
          %624 = sbr.rel (%p622) target = $region112
        $region111: #{tpu_custom_call.1} parent=91 // pred_region
          %625 = dma.done [#allocation12], 256
        $region112: #{tpu_custom_call.1} parent=91 // pred_fallthru
          _
        // Predicated region
        $region113: #{tpu_custom_call.1} parent=91 // pred_check
          %p626 = pneg %p265
        $region114: #{tpu_custom_call.1} parent=91 // pred_check_branch
          %628 = sbr.rel (%p626) target = $region116
        $region115: #{tpu_custom_call.1} parent=91 // pred_region
          %629 = dma.done [#allocation15], 16
        $region116: #{tpu_custom_call.1} parent=91 // pred_fallthru
          _
        %s630 = sand.u32 %s58, 1
        %s631 = scalar_lea.sflag [#allocation6], %s630
        %s632 = sand.u32 %s58, 1
        %s633 = smul.addr %s632, 4
        %s634 = scalar_lea.vmem [#allocation5], %s633
        %p635 = pneg %p71
        %p636 = pneg %p68
        %p637 = scmp.lt.s32.totalorder %s42, 1
        %s638 = scalar_select %p637, %s42, 1
        %s639 = scalar_lea.vmem %s1, %s638
        %p640 = pneg %p97
        %p641 = pneg %p94
        %p642 = pneg %p118
        %p643 = pneg %p115
        %p644 = pneg %p139
        %p645 = pneg %p136
        %p646 = pneg %p160
        %p647 = pneg %p157
        %p648 = pneg %p181
        %p649 = pneg %p178
        %p650 = pneg %p202
        %p651 = pneg %p199
        %p652 = pneg %p223
        %p653 = pneg %p220
        %p654 = pneg %p244
        %p655 = pneg %p241
        %p656 = pneg %p265
        %p657 = pneg %p262
        %p658 = pneg %p286
        %p659 = pneg %p283
        %p660 = pneg %p307
        %p661 = pneg %p304
        %p662 = pneg %p328
        %p663 = pneg %p325
        %p664 = pneg %p349
        %p665 = pneg %p346
        %p666 = pneg %p370
        %p667 = pneg %p367
        %p668 = pneg %p391
        %p669 = pneg %p388
        %p670 = pneg %p412
        %p671 = pneg %p409
        %p672 = pneg %p433
        %p673 = pneg %p430
        %p674 = pneg %p461
        %p675 = pneg %p458
        %s676 = sand.u32 %s448, 1
        %s677 = scalar_lea.sflag [#allocation7], %s676
        %s678 = sand.u32 %s448, 1
        %s679 = smul.addr %s678, 4
        %s680 = scalar_lea.vmem [#allocation16], %s679
        %p681 = scmp.lt.s32.totalorder %s42, 1
        %s682 = scalar_select %p681, %s42, 1
        %s683 = scalar_lea.vmem %s1, %s682
        %p685 = scmp.eq.s32.totalorder %s43, 0
        // Predicated region
        $region117: #{tpu_custom_call.1} parent=91 // pred_check
          %p686 = pneg %p685
        $region118: #{tpu_custom_call.1} parent=91 // pred_check_branch
          %688 = sbr.rel (%p686) target = $region120
        $region119: #{tpu_custom_call.1} parent=91 // pred_region
          %v689 = vld [vmem:[%s605] sm:$0xf]
          %v690 = vld [vmem:[%s4] sm:$0xf]
          %v691 = vld [vmem:[%s4 + $0x4] sm:$0xf]
          %v692 = vld [vmem:[%s4 + $0x8] sm:$0xf]
          %v693 = vld [vmem:[%s4 + $0xc] sm:$0xf]
          %v694 = vld [vmem:[#allocation10] sm:$0x1]
          %v696 = vlaneseq
          %v697 = vshrl.u32 %v696, 7
          %v698 = vsub.s32 0, %v697
          %v699 = vrot.slane %v694, %v698
          %v705 = vunpack.c.l.b16 %v690
          %v706 = vunpack.c.l.b16 %v691
          %v707 = vunpack.c.l.b16 %v692
          %v708 = vunpack.c.l.b16 %v693
          %v709 = vpack.c.b16 %v706, %v705
          %v710 = vpack.c.b16 %v708, %v707
          %vm713 = vcmask 261120
          %v715 = vsel %vm713, %v689, 0
          %717 = vmatprep.subr.bf16.mxu0 0
          %718 = vmatpush1.bf16.msra.mxu0 %v709
          %719 = vmatprep.subr.bf16.mxu0 0
          %720 = vmatpush1.bf16.msra.mxu0 %v710
          %721 = vmatprep.subr.bf16.mxu0 0
          %722 = vmatpush1.bf16.msra.mxu0 0
          %723 = vmatprep.subr.bf16.mxu0 0
          %724 = vmatpush1.bf16.msra.mxu0 0
          %725 = vmatprep.subr.bf16.mxu0 0
          %726 = vmatpush1.bf16.msra.mxu0 0
          %727 = vmatprep.subr.bf16.mxu0 0
          %728 = vmatpush1.bf16.msra.mxu0 0
          %729 = vmatprep.subr.bf16.mxu0 0
          %730 = vmatpush1.bf16.msra.mxu0 0
          %731 = vmatprep.subr.bf16.mxu0 0
          %732 = vmatpush1.bf16.msra.mxu0 0
          %733 = vmatprep.subr.bf16.mxu0 0
          %734 = vmatpush1.bf16.msra.mxu0 0
          %735 = vmatprep.subr.bf16.mxu0 0
          %736 = vmatpush1.bf16.msra.mxu0 0
          %737 = vmatprep.subr.bf16.mxu0 0
          %738 = vmatpush1.bf16.msra.mxu0 0
          %739 = vmatprep.subr.bf16.mxu0 0
          %740 = vmatpush1.bf16.msra.mxu0 0
          %741 = vmatprep.subr.bf16.mxu0 0
          %742 = vmatpush1.bf16.msra.mxu0 0
          %743 = vmatprep.subr.bf16.mxu0 0
          %744 = vmatpush1.bf16.msra.mxu0 0
          %745 = vmatprep.subr.bf16.mxu0 0
          %746 = vmatpush1.bf16.msra.mxu0 0
          %747 = vmatprep.subr.bf16.mxu0 0
          %748 = vmatpush1.bf16.msra.mxu0 0
          %749 = vmatprep.mubr.bf16.mxu0 0
          %750 = vmatmul.mubr.bf16.gmra.mrb[0].mxu0 %v715
          %v751 = vpop.f32.mrb[0].mxu0
          %v752 = vadd.f32 %v699, %v751
          %v753 = vpop.f32.mrb[0].mxu0
          %v754 = vpop.f32.mrb[0].mxu0
          %v755 = vpop.f32.mrb[0].mxu0
          %756 = vdwg.mxu0
          %v757 = vld [vmem:[%s6] sm:$0xf]
          %v758 = vld [vmem:[%s6 + $0x4] sm:$0xf]
          %v759 = vld [vmem:[%s6 + $0x8] sm:$0xf]
          %v760 = vld [vmem:[%s6 + $0xc] sm:$0xf]
          %v761 = vld [vmem:[#allocation11] sm:$0x1]
          %v763 = vlaneseq
          %v764 = vshrl.u32 %v763, 7
          %v765 = vsub.s32 0, %v764
          %v766 = vrot.slane %v761, %v765
          %v772 = vunpack.c.l.b16 %v757
          %v773 = vunpack.c.l.b16 %v758
          %v774 = vunpack.c.l.b16 %v759
          %v775 = vunpack.c.l.b16 %v760
          %v776 = vpack.c.b16 %v773, %v772
          %v777 = vpack.c.b16 %v775, %v774
          %780 = vmatprep.subr.bf16.mxu0 0
          %781 = vmatpush1.bf16.msra.mxu0 %v776
          %782 = vmatprep.subr.bf16.mxu0 0
          %783 = vmatpush1.bf16.msra.mxu0 %v777
          %784 = vmatprep.subr.bf16.mxu0 0
          %785 = vmatpush1.bf16.msra.mxu0 0
          %786 = vmatprep.subr.bf16.mxu0 0
          %787 = vmatpush1.bf16.msra.mxu0 0
          %788 = vmatprep.subr.bf16.mxu0 0
          %789 = vmatpush1.bf16.msra.mxu0 0
          %790 = vmatprep.subr.bf16.mxu0 0
          %791 = vmatpush1.bf16.msra.mxu0 0
          %792 = vmatprep.subr.bf16.mxu0 0
          %793 = vmatpush1.bf16.msra.mxu0 0
          %794 = vmatprep.subr.bf16.mxu0 0
          %795 = vmatpush1.bf16.msra.mxu0 0
          %796 = vmatprep.subr.bf16.mxu0 0
          %797 = vmatpush1.bf16.msra.mxu0 0
          %798 = vmatprep.subr.bf16.mxu0 0
          %799 = vmatpush1.bf16.msra.mxu0 0
          %800 = vmatprep.subr.bf16.mxu0 0
          %801 = vmatpush1.bf16.msra.mxu0 0
          %802 = vmatprep.subr.bf16.mxu0 0
          %803 = vmatpush1.bf16.msra.mxu0 0
          %804 = vmatprep.subr.bf16.mxu0 0
          %805 = vmatpush1.bf16.msra.mxu0 0
          %806 = vmatprep.subr.bf16.mxu0 0
          %807 = vmatpush1.bf16.msra.mxu0 0
          %808 = vmatprep.subr.bf16.mxu0 0
          %809 = vmatpush1.bf16.msra.mxu0 0
          %810 = vmatprep.subr.bf16.mxu0 0
          %811 = vmatpush1.bf16.msra.mxu0 0
          %812 = vmatprep.mubr.bf16.mxu0 0
          %813 = vmatmul.mubr.bf16.gmra.mrb[0].mxu0 %v715
          %v814 = vpop.f32.mrb[0].mxu0
          %v815 = vadd.f32 %v766, %v814
          %v816 = vpop.f32.mrb[0].mxu0
          %v817 = vpop.f32.mrb[0].mxu0
          %v818 = vpop.f32.mrb[0].mxu0
          %819 = vdwg.mxu0
          %820 = vxpose.xlu0.b32.start [1/16] %v752, 128
          %821 = vxpose.xlu0.b32.cont [2/16] 0.0, 128
          %822 = vxpose.xlu0.b32.cont [3/16] 0.0, 128
          %823 = vxpose.xlu0.b32.cont [4/16] 0.0, 128
          %824 = vxpose.xlu0.b32.cont [5/16] 0.0, 128
          %825 = vxpose.xlu0.b32.cont [6/16] 0.0, 128
          %826 = vxpose.xlu0.b32.cont [7/16] 0.0, 128
          %827 = vxpose.xlu0.b32.cont [8/16] 0.0, 128
          %828 = vxpose.xlu0.b32.cont [9/16] 0.0, 128
          %829 = vxpose.xlu0.b32.cont [10/16] 0.0, 128
          %830 = vxpose.xlu0.b32.cont [11/16] 0.0, 128
          %831 = vxpose.xlu0.b32.cont [12/16] 0.0, 128
          %832 = vxpose.xlu0.b32.cont [13/16] 0.0, 128
          %833 = vxpose.xlu0.b32.cont [14/16] 0.0, 128
          %834 = vxpose.xlu0.b32.cont [15/16] 0.0, 128
          %835 = vxpose.xlu0.b32.end [16/16] 0.0, 128
          %v836 = vpop.trf.xlu0
          %v837 = vpop.trf.xlu0
          %v838 = vpop.trf.xlu0
          %v839 = vpop.trf.xlu0
          %v840 = vpop.trf.xlu0
          %v841 = vpop.trf.xlu0
          %v842 = vpop.trf.xlu0
          %v843 = vpop.trf.xlu0
          %v844 = vpop.trf.xlu0
          %v845 = vpop.trf.xlu0
          %v846 = vpop.trf.xlu0
          %v847 = vpop.trf.xlu0
          %v848 = vpop.trf.xlu0
          %v849 = vpop.trf.xlu0
          %v850 = vpop.trf.xlu0
          %v851 = vpop.trf.xlu0
          %v852 = vpack.c.bf16 %v836, %v836
          %vm853 = vcmask 60416
          %854 = vst.msk [vmem:[#allocation3] sm:$0xf] %vm853, %v852
          %v855 = vpack.c.bf16 %v815, %v815
          %856 = vst.msk [vmem:[#allocation4] sm:$0xf] %vm853, %v855
          %858 = vrot.lane.b32.xlu0 %v752, 120
          %v859 = vpop.permute.xlu0 %858
          %861 = vxpose.xlu0.b32.start [1/16] %v859, 128
          %862 = vxpose.xlu0.b32.cont [2/16] 0.0, 128
          %863 = vxpose.xlu0.b32.cont [3/16] 0.0, 128
          %864 = vxpose.xlu0.b32.cont [4/16] 0.0, 128
          %865 = vxpose.xlu0.b32.cont [5/16] 0.0, 128
          %866 = vxpose.xlu0.b32.cont [6/16] 0.0, 128
          %867 = vxpose.xlu0.b32.cont [7/16] 0.0, 128
          %868 = vxpose.xlu0.b32.cont [8/16] 0.0, 128
          %869 = vxpose.xlu0.b32.cont [9/16] 0.0, 128
          %870 = vxpose.xlu0.b32.cont [10/16] 0.0, 128
          %871 = vxpose.xlu0.b32.cont [11/16] 0.0, 128
          %872 = vxpose.xlu0.b32.cont [12/16] 0.0, 128
          %873 = vxpose.xlu0.b32.cont [13/16] 0.0, 128
          %874 = vxpose.xlu0.b32.cont [14/16] 0.0, 128
          %875 = vxpose.xlu0.b32.cont [15/16] 0.0, 128
          %876 = vxpose.xlu0.b32.end [16/16] 0.0, 128
          %v877 = vpop.trf.xlu0
          %v878 = vpop.trf.xlu0
          %v879 = vpop.trf.xlu0
          %v880 = vpop.trf.xlu0
          %v881 = vpop.trf.xlu0
          %v882 = vpop.trf.xlu0
          %v883 = vpop.trf.xlu0
          %v884 = vpop.trf.xlu0
          %v885 = vpop.trf.xlu0
          %v886 = vpop.trf.xlu0
          %v887 = vpop.trf.xlu0
          %v888 = vpop.trf.xlu0
          %v889 = vpop.trf.xlu0
          %v890 = vpop.trf.xlu0
          %v891 = vpop.trf.xlu0
          %v892 = vpop.trf.xlu0
          %v893 = vpack.c.bf16 %v877, %v877
          %s894 = scalar_lea.vmem [#allocation3], 4
          %895 = vst.msk [vmem:[%s894] sm:$0xf] %vm853, %v893
          %v897 = vunpack.c.l.b16 %v855
          %v898 = vpack.c.b16 %v897, %v897
          %899 = vrot.lane.b32.xlu0 %v898, 120
          %v900 = vpop.permute.xlu0 %899
          %s902 = scalar_lea.vmem [#allocation4], 4
          %903 = vst.msk [vmem:[%s902] sm:$0xf] %vm853, %v900
          %904 = vrot.lane.b32.xlu0 %v752, 112
          %v905 = vpop.permute.xlu0 %904
          %907 = vxpose.xlu0.b32.start [1/16] %v905, 128
          %908 = vxpose.xlu0.b32.cont [2/16] 0.0, 128
          %909 = vxpose.xlu0.b32.cont [3/16] 0.0, 128
          %910 = vxpose.xlu0.b32.cont [4/16] 0.0, 128
          %911 = vxpose.xlu0.b32.cont [5/16] 0.0, 128
          %912 = vxpose.xlu0.b32.cont [6/16] 0.0, 128
          %913 = vxpose.xlu0.b32.cont [7/16] 0.0, 128
          %914 = vxpose.xlu0.b32.cont [8/16] 0.0, 128
          %915 = vxpose.xlu0.b32.cont [9/16] 0.0, 128
          %916 = vxpose.xlu0.b32.cont [10/16] 0.0, 128
          %917 = vxpose.xlu0.b32.cont [11/16] 0.0, 128
          %918 = vxpose.xlu0.b32.cont [12/16] 0.0, 128
          %919 = vxpose.xlu0.b32.cont [13/16] 0.0, 128
          %920 = vxpose.xlu0.b32.cont [14/16] 0.0, 128
          %921 = vxpose.xlu0.b32.cont [15/16] 0.0, 128
          %922 = vxpose.xlu0.b32.end [16/16] 0.0, 128
          %v923 = vpop.trf.xlu0
          %v924 = vpop.trf.xlu0
          %v925 = vpop.trf.xlu0
          %v926 = vpop.trf.xlu0
          %v927 = vpop.trf.xlu0
          %v928 = vpop.trf.xlu0
          %v929 = vpop.trf.xlu0
          %v930 = vpop.trf.xlu0
          %v931 = vpop.trf.xlu0
          %v932 = vpop.trf.xlu0
          %v933 = vpop.trf.xlu0
          %v934 = vpop.trf.xlu0
          %v935 = vpop.trf.xlu0
          %v936 = vpop.trf.xlu0
          %v937 = vpop.trf.xlu0
          %v938 = vpop.trf.xlu0
          %v939 = vpack.c.bf16 %v923, %v923
          %s940 = scalar_lea.vmem [#allocation3], 8
          %941 = vst.msk [vmem:[%s940] sm:$0xf] %vm853, %v939
          %942 = vrot.lane.b32.xlu0 %v898, 112
          %v943 = vpop.permute.xlu0 %942
          %s945 = scalar_lea.vmem [#allocation4], 8
          %946 = vst.msk [vmem:[%s945] sm:$0xf] %vm853, %v943
          %947 = vrot.lane.b32.xlu0 %v752, 104
          %v948 = vpop.permute.xlu0 %947
          %950 = vxpose.xlu0.b32.start [1/16] %v948, 128
          %951 = vxpose.xlu0.b32.cont [2/16] 0.0, 128
          %952 = vxpose.xlu0.b32.cont [3/16] 0.0, 128
          %953 = vxpose.xlu0.b32.cont [4/16] 0.0, 128
          %954 = vxpose.xlu0.b32.cont [5/16] 0.0, 128
          %955 = vxpose.xlu0.b32.cont [6/16] 0.0, 128
          %956 = vxpose.xlu0.b32.cont [7/16] 0.0, 128
          %957 = vxpose.xlu0.b32.cont [8/16] 0.0, 128
          %958 = vxpose.xlu0.b32.cont [9/16] 0.0, 128
          %959 = vxpose.xlu0.b32.cont [10/16] 0.0, 128
          %960 = vxpose.xlu0.b32.cont [11/16] 0.0, 128
          %961 = vxpose.xlu0.b32.cont [12/16] 0.0, 128
          %962 = vxpose.xlu0.b32.cont [13/16] 0.0, 128
          %963 = vxpose.xlu0.b32.cont [14/16] 0.0, 128
          %964 = vxpose.xlu0.b32.cont [15/16] 0.0, 128
          %965 = vxpose.xlu0.b32.end [16/16] 0.0, 128
          %v966 = vpop.trf.xlu0
          %v967 = vpop.trf.xlu0
          %v968 = vpop.trf.xlu0
          %v969 = vpop.trf.xlu0
          %v970 = vpop.trf.xlu0
          %v971 = vpop.trf.xlu0
          %v972 = vpop.trf.xlu0
          %v973 = vpop.trf.xlu0
          %v974 = vpop.trf.xlu0
          %v975 = vpop.trf.xlu0
          %v976 = vpop.trf.xlu0
          %v977 = vpop.trf.xlu0
          %v978 = vpop.trf.xlu0
          %v979 = vpop.trf.xlu0
          %v980 = vpop.trf.xlu0
          %v981 = vpop.trf.xlu0
          %v982 = vpack.c.bf16 %v966, %v966
          %s983 = scalar_lea.vmem [#allocation3], 12
          %984 = vst.msk [vmem:[%s983] sm:$0xf] %vm853, %v982
          %985 = vrot.lane.b32.xlu0 %v898, 104
          %v986 = vpop.permute.xlu0 %985
          %s988 = scalar_lea.vmem [#allocation4], 12
          %989 = vst.msk [vmem:[%s988] sm:$0xf] %vm853, %v986
        $region120: #{tpu_custom_call.1} parent=91 // pred_fallthru
          _
        %s990 = smul.u32 %s43, 8
        %s991 = sshra.s32 %s990, 3
        %s992 = sand.u32 %s990, 7
        %s993 = smul.addr %s991, 4
        %s994 = scalar_lea.vmem %s605, %s993 [#allocation5]
        %v995 = vld [vmem:[%s994] sm:$0xf]
        %v996 = vunpack.c.l.bf16 %v995
        %v997 = vld [vmem:[%s683] sm:$0x1]
        %v998 = vld [vmem:[%s2] sm:$0xf]
        %v999 = vld [vmem:[%s2 + $0x4] sm:$0xf]
        %v1000 = vld [vmem:[%s2 + $0x8] sm:$0xf]
        %v1001 = vld [vmem:[%s2 + $0xc] sm:$0xf]
        %v1002 = vld [vmem:[#allocation8] sm:$0x1]
        %v1004 = vlaneseq
        %v1005 = vshrl.u32 %v1004, 7
        %v1006 = vsub.s32 0, %v1005
        %v1007 = vrot.slane %v1002, %v1006
        %v1013 = vunpack.c.l.b16 %v998
        %v1014 = vunpack.c.l.b16 %v999
        %v1015 = vunpack.c.l.b16 %v1000
        %v1016 = vunpack.c.l.b16 %v1001
        %v1017 = vpack.c.b16 %v1014, %v1013
        %v1018 = vpack.c.b16 %v1016, %v1015
        %vm1021 = vcmask 261120
        %v1023 = vsel %vm1021, %v995, 0
        %1025 = vmatprep.subr.bf16.mxu0 0
        %1026 = vmatpush1.bf16.msra.mxu0 %v1017
        %1027 = vmatprep.subr.bf16.mxu0 0
        %1028 = vmatpush1.bf16.msra.mxu0 %v1018
        %1029 = vmatprep.subr.bf16.mxu0 0
        %1030 = vmatpush1.bf16.msra.mxu0 0
        %1031 = vmatprep.subr.bf16.mxu0 0
        %1032 = vmatpush1.bf16.msra.mxu0 0
        %1033 = vmatprep.subr.bf16.mxu0 0
        %1034 = vmatpush1.bf16.msra.mxu0 0
        %1035 = vmatprep.subr.bf16.mxu0 0
        %1036 = vmatpush1.bf16.msra.mxu0 0
        %1037 = vmatprep.subr.bf16.mxu0 0
        %1038 = vmatpush1.bf16.msra.mxu0 0
        %1039 = vmatprep.subr.bf16.mxu0 0
        %1040 = vmatpush1.bf16.msra.mxu0 0
        %1041 = vmatprep.subr.bf16.mxu0 0
        %1042 = vmatpush1.bf16.msra.mxu0 0
        %1043 = vmatprep.subr.bf16.mxu0 0
        %1044 = vmatpush1.bf16.msra.mxu0 0
        %1045 = vmatprep.subr.bf16.mxu0 0
        %1046 = vmatpush1.bf16.msra.mxu0 0
        %1047 = vmatprep.subr.bf16.mxu0 0
        %1048 = vmatpush1.bf16.msra.mxu0 0
        %1049 = vmatprep.subr.bf16.mxu0 0
        %1050 = vmatpush1.bf16.msra.mxu0 0
        %1051 = vmatprep.subr.bf16.mxu0 0
        %1052 = vmatpush1.bf16.msra.mxu0 0
        %1053 = vmatprep.subr.bf16.mxu0 0
        %1054 = vmatpush1.bf16.msra.mxu0 0
        %1055 = vmatprep.subr.bf16.mxu0 0
        %1056 = vmatpush1.bf16.msra.mxu0 0
        %1057 = vmatprep.mubr.bf16.mxu0 0
        %1058 = vmatmul.mubr.bf16.gmra.mrb[0].mxu0 %v1023
        %v1059 = vpop.f32.mrb[0].mxu0
        %v1060 = vadd.f32 %v1007, %v1059
        %v1061 = vpop.f32.mrb[0].mxu0
        %v1062 = vpop.f32.mrb[0].mxu0
        %v1063 = vpop.f32.mrb[0].mxu0
        %1064 = vdwg.mxu0
        %v1065 = vmul.f32 %v1060, 0.35355338
        %v1066 = vpack.c.bf16 %v1065, %v1065
        %vm1067 = vcmask 60416
        %1068 = vst.msk [vmem:[#allocation2] sm:$0xf] %vm1067, %v1066
        %v1070 = vunpack.c.l.b16 %v1066
        %v1071 = vpack.c.b16 %v1070, %v1070
        %1072 = vrot.lane.b32.xlu0 %v1071, 120
        %v1073 = vpop.permute.xlu0 %1072
        %s1075 = scalar_lea.vmem [#allocation2], 4
        %1076 = vst.msk [vmem:[%s1075] sm:$0xf] %vm1067, %v1073
        %1077 = vrot.lane.b32.xlu0 %v1071, 112
        %v1078 = vpop.permute.xlu0 %1077
        %s1080 = scalar_lea.vmem [#allocation2], 8
        %1081 = vst.msk [vmem:[%s1080] sm:$0xf] %vm1067, %v1078
        %1082 = vrot.lane.b32.xlu0 %v1071, 104
        %v1083 = vpop.permute.xlu0 %1082
        %s1085 = scalar_lea.vmem [#allocation2], 12
        %1086 = vst.msk [vmem:[%s1085] sm:$0xf] %vm1067, %v1083
        %v1087 = vld [vmem:[#allocation2] sm:$0xf]
        %v1088 = vld [vmem:[#allocation2 + $0x4] sm:$0xf]
        %v1089 = vld [vmem:[#allocation2 + $0x8] sm:$0xf]
        %v1090 = vld [vmem:[#allocation2 + $0xc] sm:$0xf]
        %v1091 = vld [vmem:[#allocation3] sm:$0xf]
        %v1092 = vld [vmem:[#allocation3 + $0x4] sm:$0xf]
        %v1093 = vld [vmem:[#allocation3 + $0x8] sm:$0xf]
        %v1094 = vld [vmem:[#allocation3 + $0xc] sm:$0xf]
        %v1096 = vlaneseq
        %v1097 = vshrl.u32 %v1096, 7
        %v1098 = vsub.s32 0, %v1097
        %v1099 = vrot.slane %v997, %v1098
        %vm1101 = vcmask 64512
        %v1103 = vsel %vm1101, %v1087, 0
        %vm1105 = vcmask 1043456
        %v1107 = vsel %vm1105, %v1091, 0
        %1109 = vmatprep.subr.bf16.mxu0 0
        %1110 = vmatpush1.bf16.msra.mxu0 %v1107
        %1111 = vmatprep.subr.bf16.mxu0 0
        %1112 = vmatpush1.bf16.msra.mxu0 0
        %1113 = vmatprep.subr.bf16.mxu0 0
        %1114 = vmatpush1.bf16.msra.mxu0 0
        %1115 = vmatprep.subr.bf16.mxu0 0
        %1116 = vmatpush1.bf16.msra.mxu0 0
        %1117 = vmatprep.subr.bf16.mxu0 0
        %1118 = vmatpush1.bf16.msra.mxu0 0
        %1119 = vmatprep.subr.bf16.mxu0 0
        %1120 = vmatpush1.bf16.msra.mxu0 0
        %1121 = vmatprep.subr.bf16.mxu0 0
        %1122 = vmatpush1.bf16.msra.mxu0 0
        %1123 = vmatprep.subr.bf16.mxu0 0
        %1124 = vmatpush1.bf16.msra.mxu0 0
        %1125 = vmatprep.subr.bf16.mxu0 0
        %1126 = vmatpush1.bf16.msra.mxu0 0
        %1127 = vmatprep.subr.bf16.mxu0 0
        %1128 = vmatpush1.bf16.msra.mxu0 0
        %1129 = vmatprep.subr.bf16.mxu0 0
        %1130 = vmatpush1.bf16.msra.mxu0 0
        %1131 = vmatprep.subr.bf16.mxu0 0
        %1132 = vmatpush1.bf16.msra.mxu0 0
        %1133 = vmatprep.subr.bf16.mxu0 0
        %1134 = vmatpush1.bf16.msra.mxu0 0
        %1135 = vmatprep.subr.bf16.mxu0 0
        %1136 = vmatpush1.bf16.msra.mxu0 0
        %1137 = vmatprep.subr.bf16.mxu0 0
        %1138 = vmatpush1.bf16.msra.mxu0 0
        %1139 = vmatprep.subr.bf16.mxu0 0
        %1140 = vmatpush1.bf16.msra.mxu0 0
        %1141 = vmatprep.mubr.bf16.mxu0 0
        %1142 = vmatmul.mubr.bf16.gmra.mrb[0].mxu0 %v1103
        %v1143 = vpop.f32.mrb[0].mxu0
        %v1144 = vadd.f32 %v1099, %v1143
        %v1145 = vpop.f32.mrb[0].mxu0
        %v1146 = vpop.f32.mrb[0].mxu0
        %v1147 = vpop.f32.mrb[0].mxu0
        %1148 = vdwg.mxu0
        %v1150 = vsel %vm1101, %v1088, 0
        %v1153 = vsel %vm1105, %v1092, 0
        %1155 = vmatprep.subr.bf16.mxu0 0
        %1156 = vmatpush1.bf16.msra.mxu0 %v1153
        %1157 = vmatprep.subr.bf16.mxu0 0
        %1158 = vmatpush1.bf16.msra.mxu0 0
        %1159 = vmatprep.subr.bf16.mxu0 0
        %1160 = vmatpush1.bf16.msra.mxu0 0
        %1161 = vmatprep.subr.bf16.mxu0 0
        %1162 = vmatpush1.bf16.msra.mxu0 0
        %1163 = vmatprep.subr.bf16.mxu0 0
        %1164 = vmatpush1.bf16.msra.mxu0 0
        %1165 = vmatprep.subr.bf16.mxu0 0
        %1166 = vmatpush1.bf16.msra.mxu0 0
        %1167 = vmatprep.subr.bf16.mxu0 0
        %1168 = vmatpush1.bf16.msra.mxu0 0
        %1169 = vmatprep.subr.bf16.mxu0 0
        %1170 = vmatpush1.bf16.msra.mxu0 0
        %1171 = vmatprep.subr.bf16.mxu0 0
        %1172 = vmatpush1.bf16.msra.mxu0 0
        %1173 = vmatprep.subr.bf16.mxu0 0
        %1174 = vmatpush1.bf16.msra.mxu0 0
        %1175 = vmatprep.subr.bf16.mxu0 0
        %1176 = vmatpush1.bf16.msra.mxu0 0
        %1177 = vmatprep.subr.bf16.mxu0 0
        %1178 = vmatpush1.bf16.msra.mxu0 0
        %1179 = vmatprep.subr.bf16.mxu0 0
        %1180 = vmatpush1.bf16.msra.mxu0 0
        %1181 = vmatprep.subr.bf16.mxu0 0
        %1182 = vmatpush1.bf16.msra.mxu0 0
        %1183 = vmatprep.subr.bf16.mxu0 0
        %1184 = vmatpush1.bf16.msra.mxu0 0
        %1185 = vmatprep.subr.bf16.mxu0 0
        %1186 = vmatpush1.bf16.msra.mxu0 0
        %1187 = vmatprep.mubr.bf16.mxu0 0
        %1188 = vmatmul.mubr.bf16.gmra.mrb[0].mxu0 %v1150
        %v1189 = vpop.f32.mrb[0].mxu0
        %v1190 = vadd.f32 %v1099, %v1189
        %v1191 = vpop.f32.mrb[0].mxu0
        %v1192 = vpop.f32.mrb[0].mxu0
        %v1193 = vpop.f32.mrb[0].mxu0
        %1194 = vdwg.mxu0
        %v1196 = vsel %vm1101, %v1089, 0
        %v1199 = vsel %vm1105, %v1093, 0
        %1201 = vmatprep.subr.bf16.mxu0 0
        %1202 = vmatpush1.bf16.msra.mxu0 %v1199
        %1203 = vmatprep.subr.bf16.mxu0 0
        %1204 = vmatpush1.bf16.msra.mxu0 0
        %1205 = vmatprep.subr.bf16.mxu0 0
        %1206 = vmatpush1.bf16.msra.mxu0 0
        %1207 = vmatprep.subr.bf16.mxu0 0
        %1208 = vmatpush1.bf16.msra.mxu0 0
        %1209 = vmatprep.subr.bf16.mxu0 0
        %1210 = vmatpush1.bf16.msra.mxu0 0
        %1211 = vmatprep.subr.bf16.mxu0 0
        %1212 = vmatpush1.bf16.msra.mxu0 0
        %1213 = vmatprep.subr.bf16.mxu0 0
        %1214 = vmatpush1.bf16.msra.mxu0 0
        %1215 = vmatprep.subr.bf16.mxu0 0
        %1216 = vmatpush1.bf16.msra.mxu0 0
        %1217 = vmatprep.subr.bf16.mxu0 0
        %1218 = vmatpush1.bf16.msra.mxu0 0
        %1219 = vmatprep.subr.bf16.mxu0 0
        %1220 = vmatpush1.bf16.msra.mxu0 0
        %1221 = vmatprep.subr.bf16.mxu0 0
        %1222 = vmatpush1.bf16.msra.mxu0 0
        %1223 = vmatprep.subr.bf16.mxu0 0
        %1224 = vmatpush1.bf16.msra.mxu0 0
        %1225 = vmatprep.subr.bf16.mxu0 0
        %1226 = vmatpush1.bf16.msra.mxu0 0
        %1227 = vmatprep.subr.bf16.mxu0 0
        %1228 = vmatpush1.bf16.msra.mxu0 0
        %1229 = vmatprep.subr.bf16.mxu0 0
        %1230 = vmatpush1.bf16.msra.mxu0 0
        %1231 = vmatprep.subr.bf16.mxu0 0
        %1232 = vmatpush1.bf16.msra.mxu0 0
        %1233 = vmatprep.mubr.bf16.mxu0 0
        %1234 = vmatmul.mubr.bf16.gmra.mrb[0].mxu0 %v1196
        %v1235 = vpop.f32.mrb[0].mxu0
        %v1236 = vadd.f32 %v1099, %v1235
        %v1237 = vpop.f32.mrb[0].mxu0
        %v1238 = vpop.f32.mrb[0].mxu0
        %v1239 = vpop.f32.mrb[0].mxu0
        %1240 = vdwg.mxu0
        %v1242 = vsel %vm1101, %v1090, 0
        %v1245 = vsel %vm1105, %v1094, 0
        %1247 = vmatprep.subr.bf16.mxu0 0
        %1248 = vmatpush1.bf16.msra.mxu0 %v1245
        %1249 = vmatprep.subr.bf16.mxu0 0
        %1250 = vmatpush1.bf16.msra.mxu0 0
        %1251 = vmatprep.subr.bf16.mxu0 0
        %1252 = vmatpush1.bf16.msra.mxu0 0
        %1253 = vmatprep.subr.bf16.mxu0 0
        %1254 = vmatpush1.bf16.msra.mxu0 0
        %1255 = vmatprep.subr.bf16.mxu0 0
        %1256 = vmatpush1.bf16.msra.mxu0 0
        %1257 = vmatprep.subr.bf16.mxu0 0
        %1258 = vmatpush1.bf16.msra.mxu0 0
        %1259 = vmatprep.subr.bf16.mxu0 0
        %1260 = vmatpush1.bf16.msra.mxu0 0
        %1261 = vmatprep.subr.bf16.mxu0 0
        %1262 = vmatpush1.bf16.msra.mxu0 0
        %1263 = vmatprep.subr.bf16.mxu0 0
        %1264 = vmatpush1.bf16.msra.mxu0 0
        %1265 = vmatprep.subr.bf16.mxu0 0
        %1266 = vmatpush1.bf16.msra.mxu0 0
        %1267 = vmatprep.subr.bf16.mxu0 0
        %1268 = vmatpush1.bf16.msra.mxu0 0
        %1269 = vmatprep.subr.bf16.mxu0 0
        %1270 = vmatpush1.bf16.msra.mxu0 0
        %1271 = vmatprep.subr.bf16.mxu0 0
        %1272 = vmatpush1.bf16.msra.mxu0 0
        %1273 = vmatprep.subr.bf16.mxu0 0
        %1274 = vmatpush1.bf16.msra.mxu0 0
        %1275 = vmatprep.subr.bf16.mxu0 0
        %1276 = vmatpush1.bf16.msra.mxu0 0
        %1277 = vmatprep.subr.bf16.mxu0 0
        %1278 = vmatpush1.bf16.msra.mxu0 0
        %1279 = vmatprep.mubr.bf16.mxu0 0
        %1280 = vmatmul.mubr.bf16.gmra.mrb[0].mxu0 %v1242
        %v1281 = vpop.f32.mrb[0].mxu0
        %v1282 = vadd.f32 %v1099, %v1281
        %v1283 = vpop.f32.mrb[0].mxu0
        %v1284 = vpop.f32.mrb[0].mxu0
        %v1285 = vpop.f32.mrb[0].mxu0
        %1286 = vdwg.mxu0
        %v1287 = vsel %vm1101, %v1144, -inf
        %1288 = vmax.xlane.f32.xlu0 %v1287
        %v1289 = vpop.xlane.xlu0 %1288
        %v1290 = vsel %vm1101, %v1190, -inf
        %1291 = vmax.xlane.f32.xlu0 %v1290
        %v1292 = vpop.xlane.xlu0 %1291
        %v1293 = vsel %vm1101, %v1236, -inf
        %1294 = vmax.xlane.f32.xlu0 %v1293
        %v1295 = vpop.xlane.xlu0 %1294
        %v1296 = vsel %vm1101, %v1282, -inf
        %1297 = vmax.xlane.f32.xlu0 %v1296
        %v1298 = vpop.xlane.xlu0 %1297
        %v1299 = vsub.f32 %v1144, %v1289
        %v1300 = vsub.f32 %v1190, %v1292
        %v1301 = vsub.f32 %v1236, %v1295
        %v1302 = vsub.f32 %v1282, %v1298
        %v1303 = vmul.f32 %v1299, 1.442695
        %v1304 = vpow.pop %v1303
        %v1305 = vmul.f32 %v1300, 1.442695
        %v1306 = vpow.pop %v1305
        %v1307 = vmul.f32 %v1301, 1.442695
        %v1308 = vpow.pop %v1307
        %v1309 = vmul.f32 %v1302, 1.442695
        %v1310 = vpow.pop %v1309
        %v1311 = vsel %vm1101, %v1304, 0.0
        %1312 = vadd.xlane.f32.xlu0 %v1311
        %v1313 = vpop.xlane.xlu0 %1312
        %v1314 = vsel %vm1101, %v1306, 0.0
        %1315 = vadd.xlane.f32.xlu0 %v1314
        %v1316 = vpop.xlane.xlu0 %1315
        %v1317 = vsel %vm1101, %v1308, 0.0
        %1318 = vadd.xlane.f32.xlu0 %v1317
        %v1319 = vpop.xlane.xlu0 %1318
        %v1320 = vsel %vm1101, %v1310, 0.0
        %1321 = vadd.xlane.f32.xlu0 %v1320
        %v1322 = vpop.xlane.xlu0 %1321
        %v1323 = vrcp.pop %v1313
        %v1324 = vrcp.pop %v1316
        %v1325 = vrcp.pop %v1319
        %v1326 = vrcp.pop %v1322
        %v1327 = vmul.f32 %v1304, %v1323
        %v1328 = vmul.f32 %v1306, %v1324
        %v1329 = vmul.f32 %v1308, %v1325
        %v1330 = vmul.f32 %v1310, %v1326
        %v1331 = vpack.c.bf16 %v1327, %v1327
        %v1332 = vpack.c.bf16 %v1328, %v1328
        %v1333 = vpack.c.bf16 %v1329, %v1329
        %v1334 = vpack.c.bf16 %v1330, %v1330
        %v1335 = vld [vmem:[#allocation4] sm:$0xf]
        %v1336 = vld [vmem:[#allocation4 + $0x4] sm:$0xf]
        %v1337 = vld [vmem:[#allocation4 + $0x8] sm:$0xf]
        %v1338 = vld [vmem:[#allocation4 + $0xc] sm:$0xf]
        %v1340 = vsel %vm1101, %v1331, 0
        %v1343 = vsel %vm1105, %v1335, 0
        %1345 = vmatprep.subr.bf16.mxu0 0
        %1346 = vmatpush1.bf16.msra.mxu0 %v1343
        %1347 = vmatprep.subr.bf16.mxu0 0
        %1348 = vmatpush1.bf16.msra.mxu0 0
        %1349 = vmatprep.subr.bf16.mxu0 0
        %1350 = vmatpush1.bf16.msra.mxu0 0
        %1351 = vmatprep.subr.bf16.mxu0 0
        %1352 = vmatpush1.bf16.msra.mxu0 0
        %1353 = vmatprep.subr.bf16.mxu0 0
        %1354 = vmatpush1.bf16.msra.mxu0 0
        %1355 = vmatprep.subr.bf16.mxu0 0
        %1356 = vmatpush1.bf16.msra.mxu0 0
        %1357 = vmatprep.subr.bf16.mxu0 0
        %1358 = vmatpush1.bf16.msra.mxu0 0
        %1359 = vmatprep.subr.bf16.mxu0 0
        %1360 = vmatpush1.bf16.msra.mxu0 0
        %1361 = vmatprep.subr.bf16.mxu0 0
        %1362 = vmatpush1.bf16.msra.mxu0 0
        %1363 = vmatprep.subr.bf16.mxu0 0
        %1364 = vmatpush1.bf16.msra.mxu0 0
        %1365 = vmatprep.subr.bf16.mxu0 0
        %1366 = vmatpush1.bf16.msra.mxu0 0
        %1367 = vmatprep.subr.bf16.mxu0 0
        %1368 = vmatpush1.bf16.msra.mxu0 0
        %1369 = vmatprep.subr.bf16.mxu0 0
        %1370 = vmatpush1.bf16.msra.mxu0 0
        %1371 = vmatprep.subr.bf16.mxu0 0
        %1372 = vmatpush1.bf16.msra.mxu0 0
        %1373 = vmatprep.subr.bf16.mxu0 0
        %1374 = vmatpush1.bf16.msra.mxu0 0
        %1375 = vmatprep.subr.bf16.mxu0 0
        %1376 = vmatpush1.bf16.msra.mxu0 0
        %1377 = vmatprep.mubr.bf16.mxu0 0
        %1378 = vmatmul.mubr.bf16.gmra.mrb[0].mxu0 %v1340
        %v1379 = vpop.f32.mrb[0].mxu0
        %v1380 = vadd.f32 0.0, %v1379
        %v1381 = vpop.f32.mrb[0].mxu0
        %v1382 = vpop.f32.mrb[0].mxu0
        %v1383 = vpop.f32.mrb[0].mxu0
        %1384 = vdwg.mxu0
        %v1386 = vsel %vm1101, %v1332, 0
        %v1389 = vsel %vm1105, %v1336, 0
        %1391 = vmatprep.subr.bf16.mxu0 0
        %1392 = vmatpush1.bf16.msra.mxu0 %v1389
        %1393 = vmatprep.subr.bf16.mxu0 0
        %1394 = vmatpush1.bf16.msra.mxu0 0
        %1395 = vmatprep.subr.bf16.mxu0 0
        %1396 = vmatpush1.bf16.msra.mxu0 0
        %1397 = vmatprep.subr.bf16.mxu0 0
        %1398 = vmatpush1.bf16.msra.mxu0 0
        %1399 = vmatprep.subr.bf16.mxu0 0
        %1400 = vmatpush1.bf16.msra.mxu0 0
        %1401 = vmatprep.subr.bf16.mxu0 0
        %1402 = vmatpush1.bf16.msra.mxu0 0
        %1403 = vmatprep.subr.bf16.mxu0 0
        %1404 = vmatpush1.bf16.msra.mxu0 0
        %1405 = vmatprep.subr.bf16.mxu0 0
        %1406 = vmatpush1.bf16.msra.mxu0 0
        %1407 = vmatprep.subr.bf16.mxu0 0
        %1408 = vmatpush1.bf16.msra.mxu0 0
        %1409 = vmatprep.subr.bf16.mxu0 0
        %1410 = vmatpush1.bf16.msra.mxu0 0
        %1411 = vmatprep.subr.bf16.mxu0 0
        %1412 = vmatpush1.bf16.msra.mxu0 0
        %1413 = vmatprep.subr.bf16.mxu0 0
        %1414 = vmatpush1.bf16.msra.mxu0 0
        %1415 = vmatprep.subr.bf16.mxu0 0
        %1416 = vmatpush1.bf16.msra.mxu0 0
        %1417 = vmatprep.subr.bf16.mxu0 0
        %1418 = vmatpush1.bf16.msra.mxu0 0
        %1419 = vmatprep.subr.bf16.mxu0 0
        %1420 = vmatpush1.bf16.msra.mxu0 0
        %1421 = vmatprep.subr.bf16.mxu0 0
        %1422 = vmatpush1.bf16.msra.mxu0 0
        %1423 = vmatprep.mubr.bf16.mxu0 0
        %1424 = vmatmul.mubr.bf16.gmra.mrb[0].mxu0 %v1386
        %v1425 = vpop.f32.mrb[0].mxu0
        %v1426 = vadd.f32 0.0, %v1425
        %v1427 = vpop.f32.mrb[0].mxu0
        %v1428 = vpop.f32.mrb[0].mxu0
        %v1429 = vpop.f32.mrb[0].mxu0
        %1430 = vdwg.mxu0
        %v1432 = vsel %vm1101, %v1333, 0
        %v1435 = vsel %vm1105, %v1337, 0
        %1437 = vmatprep.subr.bf16.mxu0 0
        %1438 = vmatpush1.bf16.msra.mxu0 %v1435
        %1439 = vmatprep.subr.bf16.mxu0 0
        %1440 = vmatpush1.bf16.msra.mxu0 0
        %1441 = vmatprep.subr.bf16.mxu0 0
        %1442 = vmatpush1.bf16.msra.mxu0 0
        %1443 = vmatprep.subr.bf16.mxu0 0
        %1444 = vmatpush1.bf16.msra.mxu0 0
        %1445 = vmatprep.subr.bf16.mxu0 0
        %1446 = vmatpush1.bf16.msra.mxu0 0
        %1447 = vmatprep.subr.bf16.mxu0 0
        %1448 = vmatpush1.bf16.msra.mxu0 0
        %1449 = vmatprep.subr.bf16.mxu0 0
        %1450 = vmatpush1.bf16.msra.mxu0 0
        %1451 = vmatprep.subr.bf16.mxu0 0
        %1452 = vmatpush1.bf16.msra.mxu0 0
        %1453 = vmatprep.subr.bf16.mxu0 0
        %1454 = vmatpush1.bf16.msra.mxu0 0
        %1455 = vmatprep.subr.bf16.mxu0 0
        %1456 = vmatpush1.bf16.msra.mxu0 0
        %1457 = vmatprep.subr.bf16.mxu0 0
        %1458 = vmatpush1.bf16.msra.mxu0 0
        %1459 = vmatprep.subr.bf16.mxu0 0
        %1460 = vmatpush1.bf16.msra.mxu0 0
        %1461 = vmatprep.subr.bf16.mxu0 0
        %1462 = vmatpush1.bf16.msra.mxu0 0
        %1463 = vmatprep.subr.bf16.mxu0 0
        %1464 = vmatpush1.bf16.msra.mxu0 0
        %1465 = vmatprep.subr.bf16.mxu0 0
        %1466 = vmatpush1.bf16.msra.mxu0 0
        %1467 = vmatprep.subr.bf16.mxu0 0
        %1468 = vmatpush1.bf16.msra.mxu0 0
        %1469 = vmatprep.mubr.bf16.mxu0 0
        %1470 = vmatmul.mubr.bf16.gmra.mrb[0].mxu0 %v1432
        %v1471 = vpop.f32.mrb[0].mxu0
        %v1472 = vadd.f32 0.0, %v1471
        %v1473 = vpop.f32.mrb[0].mxu0
        %v1474 = vpop.f32.mrb[0].mxu0
        %v1475 = vpop.f32.mrb[0].mxu0
        %1476 = vdwg.mxu0
        %v1478 = vsel %vm1101, %v1334, 0
        %v1481 = vsel %vm1105, %v1338, 0
        %1483 = vmatprep.subr.bf16.mxu0 0
        %1484 = vmatpush1.bf16.msra.mxu0 %v1481
        %1485 = vmatprep.subr.bf16.mxu0 0
        %1486 = vmatpush1.bf16.msra.mxu0 0
        %1487 = vmatprep.subr.bf16.mxu0 0
        %1488 = vmatpush1.bf16.msra.mxu0 0
        %1489 = vmatprep.subr.bf16.mxu0 0
        %1490 = vmatpush1.bf16.msra.mxu0 0
        %1491 = vmatprep.subr.bf16.mxu0 0
        %1492 = vmatpush1.bf16.msra.mxu0 0
        %1493 = vmatprep.subr.bf16.mxu0 0
        %1494 = vmatpush1.bf16.msra.mxu0 0
        %1495 = vmatprep.subr.bf16.mxu0 0
        %1496 = vmatpush1.bf16.msra.mxu0 0
        %1497 = vmatprep.subr.bf16.mxu0 0
        %1498 = vmatpush1.bf16.msra.mxu0 0
        %1499 = vmatprep.subr.bf16.mxu0 0
        %1500 = vmatpush1.bf16.msra.mxu0 0
        %1501 = vmatprep.subr.bf16.mxu0 0
        %1502 = vmatpush1.bf16.msra.mxu0 0
        %1503 = vmatprep.subr.bf16.mxu0 0
        %1504 = vmatpush1.bf16.msra.mxu0 0
        %1505 = vmatprep.subr.bf16.mxu0 0
        %1506 = vmatpush1.bf16.msra.mxu0 0
        %1507 = vmatprep.subr.bf16.mxu0 0
        %1508 = vmatpush1.bf16.msra.mxu0 0
        %1509 = vmatprep.subr.bf16.mxu0 0
        %1510 = vmatpush1.bf16.msra.mxu0 0
        %1511 = vmatprep.subr.bf16.mxu0 0
        %1512 = vmatpush1.bf16.msra.mxu0 0
        %1513 = vmatprep.subr.bf16.mxu0 0
        %1514 = vmatpush1.bf16.msra.mxu0 0
        %1515 = vmatprep.mubr.bf16.mxu0 0
        %1516 = vmatmul.mubr.bf16.gmra.mrb[0].mxu0 %v1478
        %v1517 = vpop.f32.mrb[0].mxu0
        %v1518 = vadd.f32 0.0, %v1517
        %v1519 = vpop.f32.mrb[0].mxu0
        %v1520 = vpop.f32.mrb[0].mxu0
        %v1521 = vpop.f32.mrb[0].mxu0
        %1522 = vdwg.mxu0
        %v1523 = vpack.c.bf16 %v1380, %v1380
        %v1524 = vld [vmem:[#allocation13] sm:$0xf]
        %v1525 = vpack.c.bf16 %v1426, %v1426
        %s1526 = scalar_lea.vmem [#allocation13], 4
        %v1527 = vld [vmem:[%s1526] sm:$0xf]
        %v1529 = vsel %vm1101, %v1525, 0
        %v1532 = vsel %vm1105, %v1527, 0
        %1534 = vmatprep.subr.bf16.mxu0 0
        %1535 = vmatpush1.bf16.msra.mxu0 %v1532
        %1536 = vmatprep.subr.bf16.mxu0 0
        %1537 = vmatpush1.bf16.msra.mxu0 0
        %1538 = vmatprep.subr.bf16.mxu0 0
        %1539 = vmatpush1.bf16.msra.mxu0 0
        %1540 = vmatprep.subr.bf16.mxu0 0
        %1541 = vmatpush1.bf16.msra.mxu0 0
        %1542 = vmatprep.subr.bf16.mxu0 0
        %1543 = vmatpush1.bf16.msra.mxu0 0
        %1544 = vmatprep.subr.bf16.mxu0 0
        %1545 = vmatpush1.bf16.msra.mxu0 0
        %1546 = vmatprep.subr.bf16.mxu0 0
        %1547 = vmatpush1.bf16.msra.mxu0 0
        %1548 = vmatprep.subr.bf16.mxu0 0
        %1549 = vmatpush1.bf16.msra.mxu0 0
        %1550 = vmatprep.subr.bf16.mxu0 0
        %1551 = vmatpush1.bf16.msra.mxu0 0
        %1552 = vmatprep.subr.bf16.mxu0 0
        %1553 = vmatpush1.bf16.msra.mxu0 0
        %1554 = vmatprep.subr.bf16.mxu0 0
        %1555 = vmatpush1.bf16.msra.mxu0 0
        %1556 = vmatprep.subr.bf16.mxu0 0
        %1557 = vmatpush1.bf16.msra.mxu0 0
        %1558 = vmatprep.subr.bf16.mxu0 0
        %1559 = vmatpush1.bf16.msra.mxu0 0
        %1560 = vmatprep.subr.bf16.mxu0 0
        %1561 = vmatpush1.bf16.msra.mxu0 0
        %1562 = vmatprep.subr.bf16.mxu0 0
        %1563 = vmatpush1.bf16.msra.mxu0 0
        %1564 = vmatprep.subr.bf16.mxu0 0
        %1565 = vmatpush1.bf16.msra.mxu0 0
        %1566 = vmatprep.mubr.bf16.mxu0 0
        %1567 = vmatmul.mubr.bf16.gmra.mrb[0].mxu0 %v1529
        %v1568 = vpop.f32.mrb[0].mxu0
        %v1569 = vadd.f32 0.0, %v1568
        %v1570 = vpop.f32.mrb[0].mxu0
        %v1571 = vpop.f32.mrb[0].mxu0
        %v1572 = vpop.f32.mrb[0].mxu0
        %1573 = vdwg.mxu0
        %v1575 = vsel %vm1101, %v1523, 0
        %v1578 = vsel %vm1105, %v1524, 0
        %1580 = vmatprep.subr.bf16.mxu0 0
        %1581 = vmatpush1.bf16.msra.mxu0 %v1578
        %1582 = vmatprep.subr.bf16.mxu0 0
        %1583 = vmatpush1.bf16.msra.mxu0 0
        %1584 = vmatprep.subr.bf16.mxu0 0
        %1585 = vmatpush1.bf16.msra.mxu0 0
        %1586 = vmatprep.subr.bf16.mxu0 0
        %1587 = vmatpush1.bf16.msra.mxu0 0
        %1588 = vmatprep.subr.bf16.mxu0 0
        %1589 = vmatpush1.bf16.msra.mxu0 0
        %1590 = vmatprep.subr.bf16.mxu0 0
        %1591 = vmatpush1.bf16.msra.mxu0 0
        %1592 = vmatprep.subr.bf16.mxu0 0
        %1593 = vmatpush1.bf16.msra.mxu0 0
        %1594 = vmatprep.subr.bf16.mxu0 0
        %1595 = vmatpush1.bf16.msra.mxu0 0
        %1596 = vmatprep.subr.bf16.mxu0 0
        %1597 = vmatpush1.bf16.msra.mxu0 0
        %1598 = vmatprep.subr.bf16.mxu0 0
        %1599 = vmatpush1.bf16.msra.mxu0 0
        %1600 = vmatprep.subr.bf16.mxu0 0
        %1601 = vmatpush1.bf16.msra.mxu0 0
        %1602 = vmatprep.subr.bf16.mxu0 0
        %1603 = vmatpush1.bf16.msra.mxu0 0
        %1604 = vmatprep.subr.bf16.mxu0 0
        %1605 = vmatpush1.bf16.msra.mxu0 0
        %1606 = vmatprep.subr.bf16.mxu0 0
        %1607 = vmatpush1.bf16.msra.mxu0 0
        %1608 = vmatprep.subr.bf16.mxu0 0
        %1609 = vmatpush1.bf16.msra.mxu0 0
        %1610 = vmatprep.subr.bf16.mxu0 0
        %1611 = vmatpush1.bf16.msra.mxu0 0
        %1612 = vmatprep.mubr.bf16.mxu0 0
        %1613 = vmatmul.mubr.bf16.gmra.mrb[0].mxu0 %v1575
        %v1614 = vpop.f32.mrb[0].mxu0
        %v1615 = vadd.f32 %v1569, %v1614
        %v1616 = vpop.f32.mrb[0].mxu0
        %v1617 = vpop.f32.mrb[0].mxu0
        %v1618 = vpop.f32.mrb[0].mxu0
        %1619 = vdwg.mxu0
        %v1620 = vpack.c.bf16 %v1472, %v1472
        %s1621 = scalar_lea.vmem [#allocation13], 8
        %v1622 = vld [vmem:[%s1621] sm:$0xf]
        %v1624 = vsel %vm1101, %v1620, 0
        %v1627 = vsel %vm1105, %v1622, 0
        %1629 = vmatprep.subr.bf16.mxu0 0
        %1630 = vmatpush1.bf16.msra.mxu0 %v1627
        %1631 = vmatprep.subr.bf16.mxu0 0
        %1632 = vmatpush1.bf16.msra.mxu0 0
        %1633 = vmatprep.subr.bf16.mxu0 0
        %1634 = vmatpush1.bf16.msra.mxu0 0
        %1635 = vmatprep.subr.bf16.mxu0 0
        %1636 = vmatpush1.bf16.msra.mxu0 0
        %1637 = vmatprep.subr.bf16.mxu0 0
        %1638 = vmatpush1.bf16.msra.mxu0 0
        %1639 = vmatprep.subr.bf16.mxu0 0
        %1640 = vmatpush1.bf16.msra.mxu0 0
        %1641 = vmatprep.subr.bf16.mxu0 0
        %1642 = vmatpush1.bf16.msra.mxu0 0
        %1643 = vmatprep.subr.bf16.mxu0 0
        %1644 = vmatpush1.bf16.msra.mxu0 0
        %1645 = vmatprep.subr.bf16.mxu0 0
        %1646 = vmatpush1.bf16.msra.mxu0 0
        %1647 = vmatprep.subr.bf16.mxu0 0
        %1648 = vmatpush1.bf16.msra.mxu0 0
        %1649 = vmatprep.subr.bf16.mxu0 0
        %1650 = vmatpush1.bf16.msra.mxu0 0
        %1651 = vmatprep.subr.bf16.mxu0 0
        %1652 = vmatpush1.bf16.msra.mxu0 0
        %1653 = vmatprep.subr.bf16.mxu0 0
        %1654 = vmatpush1.bf16.msra.mxu0 0
        %1655 = vmatprep.subr.bf16.mxu0 0
        %1656 = vmatpush1.bf16.msra.mxu0 0
        %1657 = vmatprep.subr.bf16.mxu0 0
        %1658 = vmatpush1.bf16.msra.mxu0 0
        %1659 = vmatprep.subr.bf16.mxu0 0
        %1660 = vmatpush1.bf16.msra.mxu0 0
        %1661 = vmatprep.mubr.bf16.mxu0 0
        %1662 = vmatmul.mubr.bf16.gmra.mrb[0].mxu0 %v1624
        %v1663 = vpop.f32.mrb[0].mxu0
        %v1664 = vadd.f32 0.0, %v1663
        %v1665 = vpop.f32.mrb[0].mxu0
        %v1666 = vpop.f32.mrb[0].mxu0
        %v1667 = vpop.f32.mrb[0].mxu0
        %1668 = vdwg.mxu0
        %v1669 = vadd.f32 %v1615, %v1664
        %v1670 = vpack.c.bf16 %v1518, %v1518
        %s1671 = scalar_lea.vmem [#allocation13], 12
        %v1672 = vld [vmem:[%s1671] sm:$0xf]
        %v1674 = vsel %vm1101, %v1670, 0
        %v1677 = vsel %vm1105, %v1672, 0
        %1679 = vmatprep.subr.bf16.mxu0 0
        %1680 = vmatpush1.bf16.msra.mxu0 %v1677
        %1681 = vmatprep.subr.bf16.mxu0 0
        %1682 = vmatpush1.bf16.msra.mxu0 0
        %1683 = vmatprep.subr.bf16.mxu0 0
        %1684 = vmatpush1.bf16.msra.mxu0 0
        %1685 = vmatprep.subr.bf16.mxu0 0
        %1686 = vmatpush1.bf16.msra.mxu0 0
        %1687 = vmatprep.subr.bf16.mxu0 0
        %1688 = vmatpush1.bf16.msra.mxu0 0
        %1689 = vmatprep.subr.bf16.mxu0 0
        %1690 = vmatpush1.bf16.msra.mxu0 0
        %1691 = vmatprep.subr.bf16.mxu0 0
        %1692 = vmatpush1.bf16.msra.mxu0 0
        %1693 = vmatprep.subr.bf16.mxu0 0
        %1694 = vmatpush1.bf16.msra.mxu0 0
        %1695 = vmatprep.subr.bf16.mxu0 0
        %1696 = vmatpush1.bf16.msra.mxu0 0
        %1697 = vmatprep.subr.bf16.mxu0 0
        %1698 = vmatpush1.bf16.msra.mxu0 0
        %1699 = vmatprep.subr.bf16.mxu0 0
        %1700 = vmatpush1.bf16.msra.mxu0 0
        %1701 = vmatprep.subr.bf16.mxu0 0
        %1702 = vmatpush1.bf16.msra.mxu0 0
        %1703 = vmatprep.subr.bf16.mxu0 0
        %1704 = vmatpush1.bf16.msra.mxu0 0
        %1705 = vmatprep.subr.bf16.mxu0 0
        %1706 = vmatpush1.bf16.msra.mxu0 0
        %1707 = vmatprep.subr.bf16.mxu0 0
        %1708 = vmatpush1.bf16.msra.mxu0 0
        %1709 = vmatprep.subr.bf16.mxu0 0
        %1710 = vmatpush1.bf16.msra.mxu0 0
        %1711 = vmatprep.mubr.bf16.mxu0 0
        %1712 = vmatmul.mubr.bf16.gmra.mrb[0].mxu0 %v1674
        %v1713 = vpop.f32.mrb[0].mxu0
        %v1714 = vadd.f32 0.0, %v1713
        %v1715 = vpop.f32.mrb[0].mxu0
        %v1716 = vpop.f32.mrb[0].mxu0
        %v1717 = vpop.f32.mrb[0].mxu0
        %1718 = vdwg.mxu0
        %v1719 = vadd.f32 %v1669, %v1714
        %v1720 = vld [vmem:[#allocation14] sm:$0x1]
        %v1722 = vlaneseq
        %v1723 = vshrl.u32 %v1722, 7
        %v1724 = vsub.s32 0, %v1723
        %v1725 = vrot.slane %v1720, %v1724
        %v1727 = vadd.f32 %v1719, %v1725
        %v1728 = vadd.f32 %v996, %v1727
        %v1729 = vld [vmem:[%s10] sm:$0x1]
        %v1730 = vld [vmem:[%s11] sm:$0x1]
        %v1731 = vsel %vm1021, %v1728, 0.0
        %1732 = vadd.xlane.f32.xlu0 %v1731
        %v1733 = vpop.xlane.xlu0 %1732
        %v1734 = vrcp.pop 32.0
        %v1735 = vmul.f32 %v1733, %v1734
        %v1736 = vsub.f32 %v1728, %v1735
        %v1737 = vmul.f32 %v1736, %v1736
        %v1738 = vsel %vm1021, %v1737, 0.0
        %1739 = vadd.xlane.f32.xlu0 %v1738
        %v1740 = vpop.xlane.xlu0 %1739
        %v1741 = vmul.f32 %v1740, %v1734
        %v1742 = vadd.f32 %v1741, 1e-12
        %v1743 = vrsqrt.pop %v1742
        %v1744 = vmul.f32 %v1736, %v1743
        %v1746 = vlaneseq
        %v1747 = vshrl.u32 %v1746, 7
        %v1748 = vsub.s32 0, %v1747
        %v1749 = vrot.slane %v1729, %v1748
        %v1751 = vmul.f32 %v1744, %v1749
        %v1753 = vlaneseq
        %v1754 = vshrl.u32 %v1753, 7
        %v1755 = vsub.s32 0, %v1754
        %v1756 = vrot.slane %v1730, %v1755
        %v1758 = vadd.f32 %v1751, %v1756
        %v1759 = vpack.c.bf16 %v1758, %v1758
        %v1760 = vld [vmem:[%s12] sm:$0xf]
        %v1761 = vld [vmem:[%s12 + $0x4] sm:$0xf]
        %v1762 = vld [vmem:[%s12 + $0x8] sm:$0xf]
        %v1763 = vld [vmem:[%s12 + $0xc] sm:$0xf]
        %v1764 = vld [vmem:[%s13] sm:$0x1]
        %v1766 = vlaneseq
        %v1767 = vshrl.u32 %v1766, 7
        %v1768 = vsub.s32 0, %v1767
        %v1769 = vrot.slane %v1764, %v1768
        %v1775 = vunpack.c.l.b16 %v1760
        %v1776 = vunpack.c.l.b16 %v1761
        %v1777 = vunpack.c.l.b16 %v1762
        %v1778 = vunpack.c.l.b16 %v1763
        %v1779 = vpack.c.b16 %v1776, %v1775
        %v1780 = vpack.c.b16 %v1778, %v1777
        %v1784 = vsel %vm1021, %v1759, 0
        %1786 = vmatprep.subr.bf16.mxu0 0
        %1787 = vmatpush1.bf16.msra.mxu0 %v1779
        %1788 = vmatprep.subr.bf16.mxu0 0
        %1789 = vmatpush1.bf16.msra.mxu0 %v1780
        %1790 = vmatprep.subr.bf16.mxu0 0
        %1791 = vmatpush1.bf16.msra.mxu0 0
        %1792 = vmatprep.subr.bf16.mxu0 0
        %1793 = vmatpush1.bf16.msra.mxu0 0
        %1794 = vmatprep.subr.bf16.mxu0 0
        %1795 = vmatpush1.bf16.msra.mxu0 0
        %1796 = vmatprep.subr.bf16.mxu0 0
        %1797 = vmatpush1.bf16.msra.mxu0 0
        %1798 = vmatprep.subr.bf16.mxu0 0
        %1799 = vmatpush1.bf16.msra.mxu0 0
        %1800 = vmatprep.subr.bf16.mxu0 0
        %1801 = vmatpush1.bf16.msra.mxu0 0
        %1802 = vmatprep.subr.bf16.mxu0 0
        %1803 = vmatpush1.bf16.msra.mxu0 0
        %1804 = vmatprep.subr.bf16.mxu0 0
        %1805 = vmatpush1.bf16.msra.mxu0 0
        %1806 = vmatprep.subr.bf16.mxu0 0
        %1807 = vmatpush1.bf16.msra.mxu0 0
        %1808 = vmatprep.subr.bf16.mxu0 0
        %1809 = vmatpush1.bf16.msra.mxu0 0
        %1810 = vmatprep.subr.bf16.mxu0 0
        %1811 = vmatpush1.bf16.msra.mxu0 0
        %1812 = vmatprep.subr.bf16.mxu0 0
        %1813 = vmatpush1.bf16.msra.mxu0 0
        %1814 = vmatprep.subr.bf16.mxu0 0
        %1815 = vmatpush1.bf16.msra.mxu0 0
        %1816 = vmatprep.subr.bf16.mxu0 0
        %1817 = vmatpush1.bf16.msra.mxu0 0
        %1818 = vmatprep.mubr.bf16.mxu0 0
        %1819 = vmatmul.mubr.bf16.gmra.mrb[0].mxu0 %v1784
        %v1820 = vpop.f32.mrb[0].mxu0
        %v1821 = vadd.f32 %v1769, %v1820
        %v1822 = vpop.f32.mrb[0].mxu0
        %v1823 = vpop.f32.mrb[0].mxu0
        %v1824 = vpop.f32.mrb[0].mxu0
        %1825 = vdwg.mxu0
        %v1826 = vmul.f32 %v1821, 0.5
        %v1827 = vmul.f32 %v1821, 0.044715
        %v1828 = vmul.f32 %v1827, %v1821
        %v1829 = vmul.f32 %v1828, %v1821
        %v1830 = vadd.f32 %v1821, %v1829
        %v1831 = vmul.f32 %v1830, 0.7978846
        %v1832 = vtanh.pop %v1831
        %v1833 = vadd.f32 %v1832, 1.0
        %v1834 = vmul.f32 %v1826, %v1833
        %v1835 = vpack.c.bf16 %v1834, %v1834
        %v1836 = vld [vmem:[%s14] sm:$0xf]
        %v1837 = vld [vmem:[%s14 + $0x4] sm:$0xf]
        %v1838 = vld [vmem:[%s14 + $0x8] sm:$0xf]
        %v1839 = vld [vmem:[%s14 + $0xc] sm:$0xf]
        %v1840 = vld [vmem:[%s14 + $0x10] sm:$0xf]
        %v1841 = vld [vmem:[%s14 + $0x14] sm:$0xf]
        %v1842 = vld [vmem:[%s14 + $0x18] sm:$0xf]
        %v1843 = vld [vmem:[%s14 + $0x1c] sm:$0xf]
        %v1844 = vld [vmem:[%s15] sm:$0x1]
        %v1846 = vlaneseq
        %v1847 = vshrl.u32 %v1846, 7
        %v1848 = vsub.s32 0, %v1847
        %v1849 = vrot.slane %v1844, %v1848
        %v1859 = vunpack.c.l.b16 %v1836
        %v1860 = vunpack.c.l.b16 %v1837
        %v1861 = vunpack.c.l.b16 %v1838
        %v1862 = vunpack.c.l.b16 %v1839
        %v1863 = vunpack.c.l.b16 %v1840
        %v1864 = vunpack.c.l.b16 %v1841
        %v1865 = vunpack.c.l.b16 %v1842
        %v1866 = vunpack.c.l.b16 %v1843
        %v1867 = vpack.c.b16 %v1860, %v1859
        %v1868 = vpack.c.b16 %v1862, %v1861
        %v1869 = vpack.c.b16 %v1864, %v1863
        %v1870 = vpack.c.b16 %v1866, %v1865
        %vm1875 = vcmask 523264
        %v1877 = vsel %vm1875, %v1835, 0
        %1879 = vmatprep.subr.bf16.mxu0 0
        %1880 = vmatpush1.bf16.msra.mxu0 %v1867
        %1881 = vmatprep.subr.bf16.mxu0 0
        %1882 = vmatpush1.bf16.msra.mxu0 %v1868
        %1883 = vmatprep.subr.bf16.mxu0 0
        %1884 = vmatpush1.bf16.msra.mxu0 %v1869
        %1885 = vmatprep.subr.bf16.mxu0 0
        %1886 = vmatpush1.bf16.msra.mxu0 %v1870
        %1887 = vmatprep.subr.bf16.mxu0 0
        %1888 = vmatpush1.bf16.msra.mxu0 0
        %1889 = vmatprep.subr.bf16.mxu0 0
        %1890 = vmatpush1.bf16.msra.mxu0 0
        %1891 = vmatprep.subr.bf16.mxu0 0
        %1892 = vmatpush1.bf16.msra.mxu0 0
        %1893 = vmatprep.subr.bf16.mxu0 0
        %1894 = vmatpush1.bf16.msra.mxu0 0
        %1895 = vmatprep.subr.bf16.mxu0 0
        %1896 = vmatpush1.bf16.msra.mxu0 0
        %1897 = vmatprep.subr.bf16.mxu0 0
        %1898 = vmatpush1.bf16.msra.mxu0 0
        %1899 = vmatprep.subr.bf16.mxu0 0
        %1900 = vmatpush1.bf16.msra.mxu0 0
        %1901 = vmatprep.subr.bf16.mxu0 0
        %1902 = vmatpush1.bf16.msra.mxu0 0
        %1903 = vmatprep.subr.bf16.mxu0 0
        %1904 = vmatpush1.bf16.msra.mxu0 0
        %1905 = vmatprep.subr.bf16.mxu0 0
        %1906 = vmatpush1.bf16.msra.mxu0 0
        %1907 = vmatprep.subr.bf16.mxu0 0
        %1908 = vmatpush1.bf16.msra.mxu0 0
        %1909 = vmatprep.subr.bf16.mxu0 0
        %1910 = vmatpush1.bf16.msra.mxu0 0
        %1911 = vmatprep.mubr.bf16.mxu0 0
        %1912 = vmatmul.mubr.bf16.gmra.mrb[0].mxu0 %v1877
        %v1913 = vpop.f32.mrb[0].mxu0
        %v1914 = vadd.f32 %v1849, %v1913
        %v1915 = vpop.f32.mrb[0].mxu0
        %v1916 = vpop.f32.mrb[0].mxu0
        %v1917 = vpop.f32.mrb[0].mxu0
        %1918 = vdwg.mxu0
        %v1919 = vadd.f32 %v1758, %v1914
        %v1920 = vld [vmem:[%s16] sm:$0x1]
        %v1921 = vld [vmem:[%s17] sm:$0x1]
        %v1922 = vsel %vm1021, %v1919, 0.0
        %1923 = vadd.xlane.f32.xlu0 %v1922
        %v1924 = vpop.xlane.xlu0 %1923
        %v1925 = vmul.f32 %v1924, %v1734
        %v1926 = vsub.f32 %v1919, %v1925
        %v1927 = vmul.f32 %v1926, %v1926
        %v1928 = vsel %vm1021, %v1927, 0.0
        %1929 = vadd.xlane.f32.xlu0 %v1928
        %v1930 = vpop.xlane.xlu0 %1929
        %v1931 = vmul.f32 %v1930, %v1734
        %v1932 = vadd.f32 %v1931, 1e-12
        %v1933 = vrsqrt.pop %v1932
        %v1934 = vmul.f32 %v1926, %v1933
        %v1936 = vlaneseq
        %v1937 = vshrl.u32 %v1936, 7
        %v1938 = vsub.s32 0, %v1937
        %v1939 = vrot.slane %v1920, %v1938
        %v1941 = vmul.f32 %v1934, %v1939
        %v1943 = vlaneseq
        %v1944 = vshrl.u32 %v1943, 7
        %v1945 = vsub.s32 0, %v1944
        %v1946 = vrot.slane %v1921, %v1945
        %v1948 = vadd.f32 %v1941, %v1946
        %v1949 = vpack.c.bf16 %v1948, %v1948
        %vm1950 = vcmask 257024
        %1951 = vst.msk [vmem:[%s680] sm:$0xf] %vm1950, %v1949
        %s1952 = sand.u32 %s448, 1
        %s1953 = scalar_lea.sflag [#allocation7], %s1952
        %s1954 = sand.u32 %s448, 1
        %s1955 = smul.addr %s1954, 4
        %s1956 = scalar_lea.vmem [#allocation16], %s1955
        // Predicated region
        $region121: #{tpu_custom_call.1} parent=91 // pred_check
          %p1957 = pneg %p458
        $region122: #{tpu_custom_call.1} parent=91 // pred_check_branch
          %1959 = sbr.rel (%p1957) target = $region124
        $region123: #{tpu_custom_call.1} parent=91 // pred_region
          %s1961 = ssub.s32 64, 64
          %1962 = vsyncadd %s1953, %s1961
          %s1963 = sadd.s32 %s43, %s42
          %s1964 = smul.addr %s1963, 64
          %s1965 = scalar_lea.hbm %s18, %s1964
          %s1967 = sshll.u32 %s1956, 4
          %s1968 = int_to_ptr.vmem [resolvable:$true] %s1967
          %1970 = dma.vmem_to_hbm [thread:$0]  %s1968, 64, %s1965, %s1953
        $region124: #{tpu_custom_call.1} parent=91 // pred_fallthru
          _
      $region92: #{tpu_custom_call.1} parent=5 // pred_fallthru
        _
      %p1971 = scmp.le.s32.totalorder 2, %s33
      // Predicated region
      $region125: #{tpu_custom_call.1} parent=5 // pred_check
        %p1972 = pneg %p1971
      $region126: #{tpu_custom_call.1} parent=5 // pred_check_branch
        %1974 = sbr.rel (%p1972) target = $region128
      $region127: #{tpu_custom_call.1} parent=5 // pred_region
        %s1975 = ssub.s32 %s33, 2
        // Predicated region
        $region129: #{tpu_custom_call.1} parent=127 // pred_check
          %p1976 = pneg %p464
        $region130: #{tpu_custom_call.1} parent=127 // pred_check_branch
          %1978 = sbr.rel (%p1976) target = $region132
        $region131: #{tpu_custom_call.1} parent=127 // pred_region
          %s1979 = sand.u32 %s449, 1
          %s1980 = scalar_lea.sflag [#allocation7], %s1979
          %s1981 = sand.u32 %s449, 1
          %s1982 = smul.addr %s1981, 4
          %s1983 = scalar_lea.vmem [#allocation16], %s1982
          %1984 = dma.done %s1980, 64
        $region132: #{tpu_custom_call.1} parent=127 // pred_fallthru
          _
      $region128: #{tpu_custom_call.1} parent=5 // pred_fallthru
        _
    $region6: #{tpu_custom_call.1} parent=1 // loop_footer
      %s37 = sadd.s32 1, %s33
    $region7: #{tpu_custom_call.1} parent=1 // loop_footer_branch
      %32 = sbr.rel target = $region3
    $region8: #{tpu_custom_call.1} parent=1 // loop_exit
      _
    %1985 = vsyncpa [#allocation6], 1
    %s1986 = scalar_lea.sflag [#allocation6], 1
    %1987 = vsyncpa %s1986, 1
    %1988 = vsyncpa [#allocation9], 1
    %1989 = vsyncpa [#allocation12], 1
    %1990 = vsyncpa [#allocation15], 1
    %1991 = vsyncpa [#allocation7], 1
    %s1992 = scalar_lea.sflag [#allocation7], 1
    %1993 = vsyncpa %s1992, 1

</llo_original>
